<compile_context>
chip_gen: v6e
topology: v6e:2x2x1
jax: 0.10.0
libtpu: 0.0.40
codegen_flags: <defaults>
</compile_context>

<pallas_src>
import jax
import jax.numpy as jnp
from jax.experimental import pallas as pl
from jax.experimental.pallas import tpu as pltpu

_HIGHEST = jax.lax.Precision.HIGHEST


def _round_up(n, m):
    return ((n + m - 1) // m) * m


def mlp_kernel(x_ref, w1_ref, b1_ref, w2_ref, b2_ref, w3_ref, b3_ref, o_ref):
    """Whole network for one batch tile, feature-major layout.

    x_ref : (4, TB)    activations, batch on lanes
    wK    : (out, in)  weights
    bK    : (out, 1)   biases (broadcast across lanes)
    o_ref : (2, TB)    class probabilities
    """
    x = x_ref[...]                                                    # (4, TB)

    h1 = jnp.dot(w1_ref[...], x, precision=_HIGHEST,
                 preferred_element_type=jnp.float32)                  # (32, TB)
    h1 = jnp.maximum(h1 + b1_ref[...], 0.0)

    h2 = jnp.dot(w2_ref[...], h1, precision=_HIGHEST,
                 preferred_element_type=jnp.float32)                  # (16, TB)
    h2 = jnp.maximum(h2 + b2_ref[...], 0.0)

    logits = jnp.dot(w3_ref[...], h2, precision=_HIGHEST,
                     preferred_element_type=jnp.float32)
    logits = logits + b3_ref[...]                                     # (2, TB)

    # 2-class softmax in closed (stable sigmoid) form: no XLU reductions.
    l0 = logits[0:1, :]
    l1 = logits[1:2, :]
    z = l1 - l0                                                       # (1, TB)
    e = jnp.exp(-jnp.abs(z))                                          # EUP
    p_max = 1.0 / (1.0 + e)                                           # exact
    p_min = 1.0 - p_max
    p1 = jnp.where(z >= 0.0, p_max, p_min)
    p0 = 1.0 - p1

    # Assemble (2, TB) output with a sublane-index select (pure VPU).
    row = jax.lax.broadcasted_iota(jnp.int32, o_ref.shape, 0)
    o_ref[...] = jnp.where(row == 0, p0, p1).astype(o_ref.dtype)


def net_forward(x, params, tb=512):
    """Forward pass. x: (B, 4) row-major (torch convention). Returns (B, 2)."""
    w1, b1, w2, b2, w3, b3 = params
    B = x.shape[0]

    # Feature-major: batch on the lane axis.
    xT = jnp.transpose(x).astype(jnp.float32)                         # (4, B)

    # Pick a lane-dense tile size and pad the batch to a whole number of tiles.
    if B <= tb:
        b_pad = _round_up(B, 128)
        tb_eff = b_pad
    else:
        b_pad = _round_up(B, tb)
        tb_eff = tb
    if b_pad != B:
        xT = jnp.pad(xT, ((0, 0), (0, b_pad - B)))

    grid = (b_pad // tb_eff,)

    out = pl.pallas_call(
        mlp_kernel,
        out_shape=jax.ShapeDtypeStruct((2, b_pad), jnp.float32),
        grid_spec=pltpu.PrefetchScalarGridSpec(
            num_scalar_prefetch=0,
            grid=grid,
            in_specs=[
                pl.BlockSpec((4, tb_eff), lambda i: (0, i)),     # x tile
                pl.BlockSpec((32, 4), lambda i: (0, 0)),         # w1 (resident)
                pl.BlockSpec((32, 1), lambda i: (0, 0)),         # b1
                pl.BlockSpec((16, 32), lambda i: (0, 0)),        # w2
                pl.BlockSpec((16, 1), lambda i: (0, 0)),         # b2
                pl.BlockSpec((2, 16), lambda i: (0, 0)),         # w3
                pl.BlockSpec((2, 1), lambda i: (0, 0)),          # b3
            ],
            out_specs=pl.BlockSpec((2, tb_eff), lambda i: (0, i)),
        ),
        compiler_params=pltpu.CompilerParams(
            dimension_semantics=("parallel",),                   # megacore split
        ),
    )(xT, w1, b1, w2, b2, w3, b3)

    # Back to the torch-style (B, 2) convention (layout plumbing only).
    return jnp.transpose(out[:, :B])


def init_params(key):
    """Deterministic init mirroring torch.nn.Linear defaults, stored
    feature-major: weight (out_features, in_features), bias (out_features, 1)."""
    def linear(key, fan_in, fan_out):
        kw, kb = jax.random.split(key)
        bound = 1.0 / jnp.sqrt(float(fan_in))
        w = jax.random.uniform(kw, (fan_out, fan_in), jnp.float32, -bound, bound)
        b = jax.random.uniform(kb, (fan_out, 1), jnp.float32, -bound, bound)
        return w, b

    k1, k2, k3 = jax.random.split(key, 3)
    w1, b1 = linear(k1, 4, 32)
    w2, b2 = linear(k2, 32, 16)
    w3, b3 = linear(k3, 16, 2)
    return (w1, b1, w2, b2, w3, b3)


def net_forward_ref(x, params):
    """Pure-JAX reference for correctness checking (exact f32 matmuls)."""
    w1, b1, w2, b2, w3, b3 = params
    h = jnp.maximum(jnp.dot(x, w1.T, precision=_HIGHEST) + b1.T, 0.0)
    h = jnp.maximum(jnp.dot(h, w2.T, precision=_HIGHEST) + b2.T, 0.0)
    logits = jnp.dot(h, w3.T, precision=_HIGHEST) + b3.T
    return jax.nn.softmax(logits, axis=-1)


if __name__ == "__main__":
    key = jax.random.PRNGKey(0)
    k_params, k_x1, k_x2 = jax.random.split(key, 3)

    params = init_params(k_params)

    # Small batch of CartPole-style 4-dim observations (single grid step).
    x_small = jax.random.normal(k_x1, (8, 4), dtype=jnp.float32)
    out_small = jax.block_until_ready(net_forward(x_small, params))
    ref_small = net_forward_ref(x_small, params)
    assert out_small.shape == (8, 2)
    assert jnp.allclose(out_small, ref_small, atol=2e-4, rtol=2e-4)
    assert jnp.allclose(jnp.sum(out_small, axis=-1), 1.0, atol=1e-5)

    # Rollout-sized batch: exercises padding + multi-step parallel grid.
    x_big = jax.random.normal(k_x2, (1200, 4), dtype=jnp.float32)
    out_big = jax.block_until_ready(net_forward(x_big, params))
    ref_big = net_forward_ref(x_big, params)
    assert out_big.shape == (1200, 2)
    assert jnp.allclose(out_big, ref_big, atol=2e-4, rtol=2e-4)
    assert jnp.allclose(jnp.sum(out_big, axis=-1), 1.0, atol=1e-5)

    print("KERNEL_OK")
</pallas_src>

<mosaic_0001>
module attributes {stable_mosaic.version = 11 : i64} {
  func.func @mlp_kernel(%arg0: i32, %arg1: memref<4x128xf32, #tpu.memory_space<vmem>>, %arg2: memref<32x4xf32, #tpu.memory_space<vmem>>, %arg3: memref<32x1xf32, #tpu.memory_space<vmem>>, %arg4: memref<16x32xf32, #tpu.memory_space<vmem>>, %arg5: memref<16x1xf32, #tpu.memory_space<vmem>>, %arg6: memref<2x16xf32, #tpu.memory_space<vmem>>, %arg7: memref<2x1xf32, #tpu.memory_space<vmem>>, %arg8: memref<2x128xf32, #tpu.memory_space<vmem>>) attributes {dimension_semantics = [#tpu.dimension_semantics<parallel>], iteration_bounds = array<i64: 1>, scalar_prefetch = 0 : i64, scratch_operands = 0 : i64, tpu.core_type = #tpu.core_type<tc>, window_params = [{transform_indices = @transform_0, window_bounds = array<i64: 4, 128>}, {pipeline_mode = #tpu.pipeline_mode<synchronous>, transform_indices = @transform_1, window_bounds = array<i64: 32, 4>}, {pipeline_mode = #tpu.pipeline_mode<synchronous>, transform_indices = @transform_2, window_bounds = array<i64: 32, 1>}, {pipeline_mode = #tpu.pipeline_mode<synchronous>, transform_indices = @transform_3, window_bounds = array<i64: 16, 32>}, {pipeline_mode = #tpu.pipeline_mode<synchronous>, transform_indices = @transform_4, window_bounds = array<i64: 16, 1>}, {pipeline_mode = #tpu.pipeline_mode<synchronous>, transform_indices = @transform_5, window_bounds = array<i64: 2, 16>}, {pipeline_mode = #tpu.pipeline_mode<synchronous>, transform_indices = @transform_6, window_bounds = array<i64: 2, 1>}, {transform_indices = @transform_7, window_bounds = array<i64: 2, 128>}]} {
    %c0 = arith.constant 0 : index
    %c0_0 = arith.constant 0 : index
    %0 = vector.load %arg1[%c0, %c0_0] : memref<4x128xf32, #tpu.memory_space<vmem>>, vector<4x128xf32>
    %c0_1 = arith.constant 0 : index
    %c0_2 = arith.constant 0 : index
    %1 = vector.load %arg2[%c0_1, %c0_2] : memref<32x4xf32, #tpu.memory_space<vmem>>, vector<32x4xf32>
    %cst = arith.constant dense<0.000000e+00> : vector<32x128xf32>
    %2 = tpu.matmul %1, %0, %cst {dimension_numbers = #tpu.dot_dimension_numbers<[1], [0], [0], [1], [0, 0, 1, 1], [], []>, precision = #tpu.contract_precision<fp32>} : vector<32x4xf32>, vector<4x128xf32>, vector<32x128xf32> -> vector<32x128xf32>
    %c0_3 = arith.constant 0 : index
    %c0_4 = arith.constant 0 : index
    %3 = vector.load %arg3[%c0_3, %c0_4] : memref<32x1xf32, #tpu.memory_space<vmem>>, vector<32x1xf32>
    %4 = vector.broadcast %3 : vector<32x1xf32> to vector<32x128xf32>
    %5 = arith.addf %2, %4 : vector<32x128xf32>
    %cst_5 = arith.constant 0.000000e+00 : f32
    %6 = vector.broadcast %cst_5 : f32 to vector<32x128xf32>
    %7 = arith.maximumf %5, %6 : vector<32x128xf32>
    %c0_6 = arith.constant 0 : index
    %c0_7 = arith.constant 0 : index
    %8 = vector.load %arg4[%c0_6, %c0_7] : memref<16x32xf32, #tpu.memory_space<vmem>>, vector<16x32xf32>
    %cst_8 = arith.constant dense<0.000000e+00> : vector<16x128xf32>
    %9 = tpu.matmul %8, %7, %cst_8 {dimension_numbers = #tpu.dot_dimension_numbers<[1], [0], [0], [1], [0, 0, 1, 1], [], []>, precision = #tpu.contract_precision<fp32>} : vector<16x32xf32>, vector<32x128xf32>, vector<16x128xf32> -> vector<16x128xf32>
    %c0_9 = arith.constant 0 : index
    %c0_10 = arith.constant 0 : index
    %10 = vector.load %arg5[%c0_9, %c0_10] : memref<16x1xf32, #tpu.memory_space<vmem>>, vector<16x1xf32>
    %11 = vector.broadcast %10 : vector<16x1xf32> to vector<16x128xf32>
    %12 = arith.addf %9, %11 : vector<16x128xf32>
    %cst_11 = arith.constant 0.000000e+00 : f32
    %13 = vector.broadcast %cst_11 : f32 to vector<16x128xf32>
    %14 = arith.maximumf %12, %13 : vector<16x128xf32>
    %c0_12 = arith.constant 0 : index
    %c0_13 = arith.constant 0 : index
    %15 = vector.load %arg6[%c0_12, %c0_13] : memref<2x16xf32, #tpu.memory_space<vmem>>, vector<2x16xf32>
    %cst_14 = arith.constant dense<0.000000e+00> : vector<2x128xf32>
    %16 = tpu.matmul %15, %14, %cst_14 {dimension_numbers = #tpu.dot_dimension_numbers<[1], [0], [0], [1], [0, 0, 1, 1], [], []>, precision = #tpu.contract_precision<fp32>} : vector<2x16xf32>, vector<16x128xf32>, vector<2x128xf32> -> vector<2x128xf32>
    %c0_15 = arith.constant 0 : index
    %c0_16 = arith.constant 0 : index
    %17 = vector.load %arg7[%c0_15, %c0_16] : memref<2x1xf32, #tpu.memory_space<vmem>>, vector<2x1xf32>
    %18 = vector.broadcast %17 : vector<2x1xf32> to vector<2x128xf32>
    %19 = arith.addf %16, %18 : vector<2x128xf32>
    %20 = vector.extract_strided_slice %19 {offsets = [0, 0], sizes = [1, 128], strides = [1, 1]} : vector<2x128xf32> to vector<1x128xf32>
    %21 = vector.extract_strided_slice %19 {offsets = [1, 0], sizes = [1, 128], strides = [1, 1]} : vector<2x128xf32> to vector<1x128xf32>
    %22 = arith.subf %21, %20 : vector<1x128xf32>
    %23 = math.absf %22 : vector<1x128xf32>
    %cst_17 = arith.constant 0.000000e+00 : f32
    %24 = vector.broadcast %cst_17 : f32 to vector<1x128xf32>
    %25 = arith.subf %24, %23 : vector<1x128xf32>
    %26 = math.exp %25 : vector<1x128xf32>
    %cst_18 = arith.constant 1.000000e+00 : f32
    %27 = vector.broadcast %cst_18 : f32 to vector<1x128xf32>
    %28 = arith.addf %27, %26 : vector<1x128xf32>
    %cst_19 = arith.constant 1.000000e+00 : f32
    %29 = vector.broadcast %cst_19 : f32 to vector<1x128xf32>
    %30 = arith.divf %29, %28 : vector<1x128xf32>
    %cst_20 = arith.constant 1.000000e+00 : f32
    %31 = vector.broadcast %cst_20 : f32 to vector<1x128xf32>
    %32 = arith.subf %31, %30 : vector<1x128xf32>
    %cst_21 = arith.constant 0.000000e+00 : f32
    %33 = vector.broadcast %cst_21 : f32 to vector<1x128xf32>
    %34 = arith.cmpf oge, %22, %33 : vector<1x128xf32>
    %35 = arith.select %34, %30, %32 : vector<1x128xi1>, vector<1x128xf32>
    %cst_22 = arith.constant 1.000000e+00 : f32
    %36 = vector.broadcast %cst_22 : f32 to vector<1x128xf32>
    %37 = arith.subf %36, %35 : vector<1x128xf32>
    %38 = tpu.iota {dimensions = array<i32: 0>} : vector<2x128xi32>
    %c0_i32 = arith.constant 0 : i32
    %39 = vector.broadcast %c0_i32 : i32 to vector<2x128xi32>
    %40 = arith.cmpi eq, %38, %39 : vector<2x128xi32>
    %41 = vector.shape_cast %37 : vector<1x128xf32> to vector<1x128xf32>
    %42 = vector.broadcast %41 : vector<1x128xf32> to vector<2x128xf32>
    %43 = vector.shape_cast %35 : vector<1x128xf32> to vector<1x128xf32>
    %44 = vector.broadcast %43 : vector<1x128xf32> to vector<2x128xf32>
    %45 = arith.select %40, %42, %44 : vector<2x128xi1>, vector<2x128xf32>
    %c0_23 = arith.constant 0 : index
    %c0_24 = arith.constant 0 : index
    %46 = vector.load %arg8[%c0_23, %c0_24] : memref<2x128xf32, #tpu.memory_space<vmem>>, vector<2x128xf32>
    tpu.vector_store %arg8[%c0_23, %c0_24], %45 {strides = array<i32>} : memref<2x128xf32, #tpu.memory_space<vmem>>, vector<2x128xf32>,
    return
  }
  func.func @transform_0(%arg0: i32) -> (i32, i32) {
    %c0_i32 = arith.constant 0 : i32
    %c0_i32_0 = arith.constant 0 : i32
    return %c0_i32, %arg0 : i32, i32
  }
  func.func @transform_1(%arg0: i32) -> (i32, i32) {
    %c0_i32 = arith.constant 0 : i32
    %c0_i32_0 = arith.constant 0 : i32
    %c0_i32_1 = arith.constant 0 : i32
    return %c0_i32, %c0_i32_0 : i32, i32
  }
  func.func @transform_2(%arg0: i32) -> (i32, i32) {
    %c0_i32 = arith.constant 0 : i32
    %c0_i32_0 = arith.constant 0 : i32
    %c0_i32_1 = arith.constant 0 : i32
    return %c0_i32, %c0_i32_0 : i32, i32
  }
  func.func @transform_3(%arg0: i32) -> (i32, i32) {
    %c0_i32 = arith.constant 0 : i32
    %c0_i32_0 = arith.constant 0 : i32
    %c0_i32_1 = arith.constant 0 : i32
    return %c0_i32, %c0_i32_0 : i32, i32
  }
  func.func @transform_4(%arg0: i32) -> (i32, i32) {
    %c0_i32 = arith.constant 0 : i32
    %c0_i32_0 = arith.constant 0 : i32
    %c0_i32_1 = arith.constant 0 : i32
    return %c0_i32, %c0_i32_0 : i32, i32
  }
  func.func @transform_5(%arg0: i32) -> (i32, i32) {
    %c0_i32 = arith.constant 0 : i32
    %c0_i32_0 = arith.constant 0 : i32
    %c0_i32_1 = arith.constant 0 : i32
    return %c0_i32, %c0_i32_0 : i32, i32
  }
  func.func @transform_6(%arg0: i32) -> (i32, i32) {
    %c0_i32 = arith.constant 0 : i32
    %c0_i32_0 = arith.constant 0 : i32
    %c0_i32_1 = arith.constant 0 : i32
    return %c0_i32, %c0_i32_0 : i32, i32
  }
  func.func @transform_7(%arg0: i32) -> (i32, i32) {
    %c0_i32 = arith.constant 0 : i32
    %c0_i32_0 = arith.constant 0 : i32
    return %c0_i32, %arg0 : i32, i32
  }
}

</mosaic_0001>

<llo_original>
// kernel: tpu_custom_call.1
$region0: #{tpu_custom_call.1}
  #allocation0 [shape = 'u32[]', space=smem, size = 0x4, offset = 0x4, fixed_abs, tag = 'smem constant byte address 0x4 - core index']
  #allocation1 [shape = 'u32[144,128]{1,0:T(1,128)}', space=vmem, size = 0x12000, scoped, tag = 'internal scratch']
  %s0 = inlined_call_operand.vmem [shape: f32[4,128], index: 0, kind: input, shape index: {}]
  %s1 = inlined_call_operand.vmem [shape: f32[32,4], index: 1, kind: input, shape index: {}]
  %s2 = inlined_call_operand.vmem [shape: f32[32,1], index: 2, kind: input, shape index: {}]
  %s3 = inlined_call_operand.vmem [shape: f32[16,32], index: 3, kind: input, shape index: {}]
  %s4 = inlined_call_operand.vmem [shape: f32[16,1], index: 4, kind: input, shape index: {}]
  %s5 = inlined_call_operand.vmem [shape: f32[2,16], index: 5, kind: input, shape index: {}]
  %s6 = inlined_call_operand.vmem [shape: f32[2,1], index: 6, kind: input, shape index: {}]
  %s7 = inlined_call_operand.hbm [shape: f32[2,128], index: 7, kind: output, shape index: {}]
  %s8 = sld [smem:[#allocation0]]
  $region38: #{tpu_custom_call.1} parent=0
    _
  %s10 = ssub.s32 1, %s8
  %s11 = scalar_select 0, %s10, %s8
  $region1: #{tpu_custom_call.1} parent=0
    #allocation2 [shape = 'u8[1024]{0}', space=vmem, size = 0x400, scoped, tag = 'output window, operand 0, single buffered']
    #allocation3 [shape = 's32[1]{0}', space=sflag, size = 0x4, scoped, tag = 'scoped memory for tpu_custom_call.1']
    %12 = vsyncpa [#allocation3], 0
    // Predicated region
    $region2: #{tpu_custom_call.1} parent=1 // pred_check
      _
    $region3: #{tpu_custom_call.1} parent=1 // pred_check_branch
      %14 = sbr.rel (0) target = $region5
    $region4: #{tpu_custom_call.1} parent=1 // pred_region
      _
    $region5: #{tpu_custom_call.1} parent=1 // pred_fallthru
      _
    // Predicated region
    $region6: #{tpu_custom_call.1} parent=1 // pred_check
      _
    $region7: #{tpu_custom_call.1} parent=1 // pred_check_branch
      %16 = sbr.rel (0) target = $region9
    $region8: #{tpu_custom_call.1} parent=1 // pred_region
      _
    $region9: #{tpu_custom_call.1} parent=1 // pred_fallthru
      _
    // Predicated region
    $region10: #{tpu_custom_call.1} parent=1 // pred_check
      _
    $region11: #{tpu_custom_call.1} parent=1 // pred_check_branch
      %18 = sbr.rel (0) target = $region13
    $region12: #{tpu_custom_call.1} parent=1 // pred_region
      _
    $region13: #{tpu_custom_call.1} parent=1 // pred_fallthru
      _
    // Predicated region
    $region14: #{tpu_custom_call.1} parent=1 // pred_check
      _
    $region15: #{tpu_custom_call.1} parent=1 // pred_check_branch
      %20 = sbr.rel (0) target = $region17
    $region16: #{tpu_custom_call.1} parent=1 // pred_region
      _
    $region17: #{tpu_custom_call.1} parent=1 // pred_fallthru
      _
    // Predicated region
    $region18: #{tpu_custom_call.1} parent=1 // pred_check
      _
    $region19: #{tpu_custom_call.1} parent=1 // pred_check_branch
      %22 = sbr.rel (0) target = $region21
    $region20: #{tpu_custom_call.1} parent=1 // pred_region
      _
    $region21: #{tpu_custom_call.1} parent=1 // pred_fallthru
      _
    // Predicated region
    $region22: #{tpu_custom_call.1} parent=1 // pred_check
      _
    $region23: #{tpu_custom_call.1} parent=1 // pred_check_branch
      %24 = sbr.rel (0) target = $region25
    $region24: #{tpu_custom_call.1} parent=1 // pred_region
      _
    $region25: #{tpu_custom_call.1} parent=1 // pred_fallthru
      _
    // Predicated region
    $region26: #{tpu_custom_call.1} parent=1 // pred_check
      _
    $region27: #{tpu_custom_call.1} parent=1 // pred_check_branch
      %26 = sbr.rel (0) target = $region29
    $region28: #{tpu_custom_call.1} parent=1 // pred_region
      _
    $region29: #{tpu_custom_call.1} parent=1 // pred_fallthru
      _
    %v27 = vld [vmem:[%s0] sm:$0xf]
    %v28 = vld [vmem:[%s1] sm:$0xff]
    %v29 = vld [vmem:[%s1 + $0x8] sm:$0xff]
    %v30 = vld [vmem:[%s1 + $0x10] sm:$0xff]
    %v31 = vld [vmem:[%s1 + $0x18] sm:$0xff]
    %v32 = vld [vmem:[%s2] sm:$0xff]
    %v33 = vld [vmem:[%s2 + $0x8] sm:$0xff]
    %v34 = vld [vmem:[%s2 + $0x10] sm:$0xff]
    %v35 = vld [vmem:[%s2 + $0x18] sm:$0xff]
    %37 = vset.pattern.permute.xlu0 0
    %38 = vperm.xlu0 %37, %v32
    %v39 = vpop.permute.xlu0 %38
    %42 = vset.pattern.permute.xlu0 0
    %43 = vperm.xlu0 %42, %v33
    %v44 = vpop.permute.xlu0 %43
    %47 = vset.pattern.permute.xlu0 0
    %48 = vperm.xlu0 %47, %v34
    %v49 = vpop.permute.xlu0 %48
    %52 = vset.pattern.permute.xlu0 0
    %53 = vperm.xlu0 %52, %v35
    %v54 = vpop.permute.xlu0 %53
    %vm56 = vcmask 31744
    %v58 = vsel %vm56, %v28, 0
    %v61 = vsel %vm56, %v29, 0
    %v64 = vsel %vm56, %v30, 0
    %v67 = vsel %vm56, %v31, 0
    %vm69 = vcmask 1043456
    %v71 = vsel %vm69, %v27, 0
    %73 = vmatprep.subr.mxu0 0.0
    %74 = vmatpush1.msra.mxu0 0.0
    %75 = vmatprep.subr.mxu0 0.0
    %76 = vmatpush1.msra.mxu0 0.0
    %77 = vmatprep.subr.mxu0 0.0
    %78 = vmatpush1.msra.mxu0 0.0
    %79 = vmatprep.subr.mxu0 0.0
    %80 = vmatpush1.msra.mxu0 0.0
    %81 = vmatprep.subr.mxu0 0.0
    %82 = vmatpush1.msra.mxu0 0.0
    %83 = vmatprep.subr.mxu0 0.0
    %84 = vmatpush1.msra.mxu0 0.0
    %85 = vmatprep.subr.mxu0 0.0
    %86 = vmatpush1.msra.mxu0 0.0
    %87 = vmatprep.subr.mxu0 0.0
    %88 = vmatpush1.msra.mxu0 0.0
    %89 = vmatprep.subr.mxu0 0.0
    %90 = vmatpush1.msra.mxu0 0.0
    %91 = vmatprep.subr.mxu0 0.0
    %92 = vmatpush1.msra.mxu0 0.0
    %93 = vmatprep.subr.mxu0 0.0
    %94 = vmatpush1.msra.mxu0 0.0
    %95 = vmatprep.subr.mxu0 0.0
    %96 = vmatpush1.msra.mxu0 0.0
    %97 = vmatprep.subr.mxu0 0.0
    %98 = vmatpush1.msra.mxu0 0.0
    %99 = vmatprep.subr.mxu0 0.0
    %100 = vmatpush1.msra.mxu0 0.0
    %101 = vmatprep.subr.mxu0 0.0
    %102 = vmatpush1.msra.mxu0 0.0
    %103 = vmatprep.subr.mxu0 0.0
    %v104 = vand.u32 %v71, 4294901760
    %105 = vmatpush1.msra.mxu0 %v104
    %106 = vmatprep.subr.mxu0 0.0
    %107 = vmatpush2.msra.mxu0 0.0
    %108 = vmatprep.subr.mxu0 0.0
    %109 = vmatpush2.msra.mxu0 0.0
    %110 = vmatprep.subr.mxu0 0.0
    %111 = vmatpush2.msra.mxu0 0.0
    %112 = vmatprep.subr.mxu0 0.0
    %113 = vmatpush2.msra.mxu0 0.0
    %114 = vmatprep.subr.mxu0 0.0
    %115 = vmatpush2.msra.mxu0 0.0
    %116 = vmatprep.subr.mxu0 0.0
    %117 = vmatpush2.msra.mxu0 0.0
    %118 = vmatprep.subr.mxu0 0.0
    %119 = vmatpush2.msra.mxu0 0.0
    %120 = vmatprep.subr.mxu0 0.0
    %121 = vmatpush2.msra.mxu0 0.0
    %122 = vmatprep.subr.mxu0 0.0
    %123 = vmatpush2.msra.mxu0 0.0
    %124 = vmatprep.subr.mxu0 0.0
    %125 = vmatpush2.msra.mxu0 0.0
    %126 = vmatprep.subr.mxu0 0.0
    %127 = vmatpush2.msra.mxu0 0.0
    %128 = vmatprep.subr.mxu0 0.0
    %129 = vmatpush2.msra.mxu0 0.0
    %130 = vmatprep.subr.mxu0 0.0
    %131 = vmatpush2.msra.mxu0 0.0
    %132 = vmatprep.subr.mxu0 0.0
    %133 = vmatpush2.msra.mxu0 0.0
    %134 = vmatprep.subr.mxu0 0.0
    %135 = vmatpush2.msra.mxu0 0.0
    %136 = vmatprep.subr.mxu0 0.0
    %137 = vmatpush2.msra.mxu0 0.0
    %138 = vmatprep.mubr.f32.mxu0 0.0
    %v139 = vand.u32 %v58, 4294901760
    %v140 = vsub.f32 %v58, %v139
    %v141 = vand.u32 %v140, 4294901760
    %v142 = vsub.f32 %v140, %v141
    %v143 = vand.u32 %v142, 4294901760
    %144 = vmatmul.mubr.f32.gmra.mxu0 %v143
    %v145 = vpop.f32.mrf.mxu0
    %v146 = vadd.f32 %v39, %v145
    %v147 = vpop.f32.mrf.mxu0
    %148 = vmatprep.mubr.f32.mxu0 0.0
    %v149 = vand.u32 %v61, 4294901760
    %v150 = vsub.f32 %v61, %v149
    %v151 = vand.u32 %v150, 4294901760
    %v152 = vsub.f32 %v150, %v151
    %v153 = vand.u32 %v152, 4294901760
    %154 = vmatmul.mubr.f32.gmra.mxu0 %v153
    %v155 = vpop.f32.mrf.mxu0
    %v156 = vadd.f32 %v44, %v155
    %v157 = vpop.f32.mrf.mxu0
    %158 = vmatprep.mubr.f32.mxu0 0.0
    %v159 = vand.u32 %v64, 4294901760
    %v160 = vsub.f32 %v64, %v159
    %v161 = vand.u32 %v160, 4294901760
    %v162 = vsub.f32 %v160, %v161
    %v163 = vand.u32 %v162, 4294901760
    %164 = vmatmul.mubr.f32.gmra.mxu0 %v163
    %v165 = vpop.f32.mrf.mxu0
    %v166 = vadd.f32 %v49, %v165
    %v167 = vpop.f32.mrf.mxu0
    %168 = vmatprep.mubr.f32.mxu0 0.0
    %v169 = vand.u32 %v67, 4294901760
    %v170 = vsub.f32 %v67, %v169
    %v171 = vand.u32 %v170, 4294901760
    %v172 = vsub.f32 %v170, %v171
    %v173 = vand.u32 %v172, 4294901760
    %174 = vmatmul.mubr.f32.gmra.mxu0 %v173
    %v175 = vpop.f32.mrf.mxu0
    %v176 = vadd.f32 %v54, %v175
    %v177 = vpop.f32.mrf.mxu0
    %178 = vdwg.mxu0
    %179 = vmatprep.subr.mxu0 0.0
    %180 = vmatpush1.msra.mxu0 0.0
    %181 = vmatprep.subr.mxu0 0.0
    %182 = vmatpush1.msra.mxu0 0.0
    %183 = vmatprep.subr.mxu0 0.0
    %184 = vmatpush1.msra.mxu0 0.0
    %185 = vmatprep.subr.mxu0 0.0
    %186 = vmatpush1.msra.mxu0 0.0
    %187 = vmatprep.subr.mxu0 0.0
    %188 = vmatpush1.msra.mxu0 0.0
    %189 = vmatprep.subr.mxu0 0.0
    %190 = vmatpush1.msra.mxu0 0.0
    %191 = vmatprep.subr.mxu0 0.0
    %192 = vmatpush1.msra.mxu0 0.0
    %193 = vmatprep.subr.mxu0 0.0
    %194 = vmatpush1.msra.mxu0 0.0
    %195 = vmatprep.subr.mxu0 0.0
    %196 = vmatpush1.msra.mxu0 0.0
    %197 = vmatprep.subr.mxu0 0.0
    %198 = vmatpush1.msra.mxu0 0.0
    %199 = vmatprep.subr.mxu0 0.0
    %200 = vmatpush1.msra.mxu0 0.0
    %201 = vmatprep.subr.mxu0 0.0
    %202 = vmatpush1.msra.mxu0 0.0
    %203 = vmatprep.subr.mxu0 0.0
    %204 = vmatpush1.msra.mxu0 0.0
    %205 = vmatprep.subr.mxu0 0.0
    %206 = vmatpush1.msra.mxu0 0.0
    %207 = vmatprep.subr.mxu0 0.0
    %208 = vmatpush1.msra.mxu0 0.0
    %209 = vmatprep.subr.mxu0 0.0
    %v210 = vand.u32 %v71, 4294901760
    %v211 = vsub.f32 %v71, %v210
    %v212 = vand.u32 %v211, 4294901760
    %v213 = vsub.f32 %v211, %v212
    %v214 = vand.u32 %v213, 4294901760
    %215 = vmatpush1.msra.mxu0 %v214
    %216 = vmatprep.subr.mxu0 0.0
    %217 = vmatpush2.msra.mxu0 0.0
    %218 = vmatprep.subr.mxu0 0.0
    %219 = vmatpush2.msra.mxu0 0.0
    %220 = vmatprep.subr.mxu0 0.0
    %221 = vmatpush2.msra.mxu0 0.0
    %222 = vmatprep.subr.mxu0 0.0
    %223 = vmatpush2.msra.mxu0 0.0
    %224 = vmatprep.subr.mxu0 0.0
    %225 = vmatpush2.msra.mxu0 0.0
    %226 = vmatprep.subr.mxu0 0.0
    %227 = vmatpush2.msra.mxu0 0.0
    %228 = vmatprep.subr.mxu0 0.0
    %229 = vmatpush2.msra.mxu0 0.0
    %230 = vmatprep.subr.mxu0 0.0
    %231 = vmatpush2.msra.mxu0 0.0
    %232 = vmatprep.subr.mxu0 0.0
    %233 = vmatpush2.msra.mxu0 0.0
    %234 = vmatprep.subr.mxu0 0.0
    %235 = vmatpush2.msra.mxu0 0.0
    %236 = vmatprep.subr.mxu0 0.0
    %237 = vmatpush2.msra.mxu0 0.0
    %238 = vmatprep.subr.mxu0 0.0
    %239 = vmatpush2.msra.mxu0 0.0
    %240 = vmatprep.subr.mxu0 0.0
    %241 = vmatpush2.msra.mxu0 0.0
    %242 = vmatprep.subr.mxu0 0.0
    %243 = vmatpush2.msra.mxu0 0.0
    %244 = vmatprep.subr.mxu0 0.0
    %245 = vmatpush2.msra.mxu0 0.0
    %246 = vmatprep.subr.mxu0 0.0
    %247 = vmatpush2.msra.mxu0 0.0
    %248 = vmatprep.mubr.f32.mxu0 0.0
    %v249 = vand.u32 %v58, 4294901760
    %250 = vmatmul.mubr.f32.gmra.mxu0 %v249
    %v251 = vpop.f32.mrf.mxu0
    %v252 = vadd.f32 %v146, %v251
    %v253 = vpop.f32.mrf.mxu0
    %254 = vmatprep.mubr.f32.mxu0 0.0
    %v255 = vand.u32 %v61, 4294901760
    %256 = vmatmul.mubr.f32.gmra.mxu0 %v255
    %v257 = vpop.f32.mrf.mxu0
    %v258 = vadd.f32 %v156, %v257
    %v259 = vpop.f32.mrf.mxu0
    %260 = vmatprep.mubr.f32.mxu0 0.0
    %v261 = vand.u32 %v64, 4294901760
    %262 = vmatmul.mubr.f32.gmra.mxu0 %v261
    %v263 = vpop.f32.mrf.mxu0
    %v264 = vadd.f32 %v166, %v263
    %v265 = vpop.f32.mrf.mxu0
    %266 = vmatprep.mubr.f32.mxu0 0.0
    %v267 = vand.u32 %v67, 4294901760
    %268 = vmatmul.mubr.f32.gmra.mxu0 %v267
    %v269 = vpop.f32.mrf.mxu0
    %v270 = vadd.f32 %v176, %v269
    %v271 = vpop.f32.mrf.mxu0
    %272 = vdwg.mxu0
    %273 = vmatprep.subr.mxu0 0.0
    %274 = vmatpush1.msra.mxu0 0.0
    %275 = vmatprep.subr.mxu0 0.0
    %276 = vmatpush1.msra.mxu0 0.0
    %277 = vmatprep.subr.mxu0 0.0
    %278 = vmatpush1.msra.mxu0 0.0
    %279 = vmatprep.subr.mxu0 0.0
    %280 = vmatpush1.msra.mxu0 0.0
    %281 = vmatprep.subr.mxu0 0.0
    %282 = vmatpush1.msra.mxu0 0.0
    %283 = vmatprep.subr.mxu0 0.0
    %284 = vmatpush1.msra.mxu0 0.0
    %285 = vmatprep.subr.mxu0 0.0
    %286 = vmatpush1.msra.mxu0 0.0
    %287 = vmatprep.subr.mxu0 0.0
    %288 = vmatpush1.msra.mxu0 0.0
    %289 = vmatprep.subr.mxu0 0.0
    %290 = vmatpush1.msra.mxu0 0.0
    %291 = vmatprep.subr.mxu0 0.0
    %292 = vmatpush1.msra.mxu0 0.0
    %293 = vmatprep.subr.mxu0 0.0
    %294 = vmatpush1.msra.mxu0 0.0
    %295 = vmatprep.subr.mxu0 0.0
    %296 = vmatpush1.msra.mxu0 0.0
    %297 = vmatprep.subr.mxu0 0.0
    %298 = vmatpush1.msra.mxu0 0.0
    %299 = vmatprep.subr.mxu0 0.0
    %300 = vmatpush1.msra.mxu0 0.0
    %301 = vmatprep.subr.mxu0 0.0
    %302 = vmatpush1.msra.mxu0 0.0
    %303 = vmatprep.subr.mxu0 0.0
    %v304 = vand.u32 %v71, 4294901760
    %v305 = vsub.f32 %v71, %v304
    %306 = vmatpush1.msra.mxu0 %v305
    %307 = vmatprep.subr.mxu0 0.0
    %308 = vmatpush2.msra.mxu0 0.0
    %309 = vmatprep.subr.mxu0 0.0
    %310 = vmatpush2.msra.mxu0 0.0
    %311 = vmatprep.subr.mxu0 0.0
    %312 = vmatpush2.msra.mxu0 0.0
    %313 = vmatprep.subr.mxu0 0.0
    %314 = vmatpush2.msra.mxu0 0.0
    %315 = vmatprep.subr.mxu0 0.0
    %316 = vmatpush2.msra.mxu0 0.0
    %317 = vmatprep.subr.mxu0 0.0
    %318 = vmatpush2.msra.mxu0 0.0
    %319 = vmatprep.subr.mxu0 0.0
    %320 = vmatpush2.msra.mxu0 0.0
    %321 = vmatprep.subr.mxu0 0.0
    %322 = vmatpush2.msra.mxu0 0.0
    %323 = vmatprep.subr.mxu0 0.0
    %324 = vmatpush2.msra.mxu0 0.0
    %325 = vmatprep.subr.mxu0 0.0
    %326 = vmatpush2.msra.mxu0 0.0
    %327 = vmatprep.subr.mxu0 0.0
    %328 = vmatpush2.msra.mxu0 0.0
    %329 = vmatprep.subr.mxu0 0.0
    %330 = vmatpush2.msra.mxu0 0.0
    %331 = vmatprep.subr.mxu0 0.0
    %332 = vmatpush2.msra.mxu0 0.0
    %333 = vmatprep.subr.mxu0 0.0
    %334 = vmatpush2.msra.mxu0 0.0
    %335 = vmatprep.subr.mxu0 0.0
    %336 = vmatpush2.msra.mxu0 0.0
    %337 = vmatprep.subr.mxu0 0.0
    %338 = vmatpush2.msra.mxu0 0.0
    %339 = vmatprep.mubr.f32.mxu0 0.0
    %v340 = vand.u32 %v58, 4294901760
    %v341 = vsub.f32 %v58, %v340
    %342 = vmatmul.mubr.f32.gmra.mxu0 %v341
    %v343 = vpop.f32.mrf.mxu0
    %v344 = vadd.f32 %v252, %v343
    %v345 = vpop.f32.mrf.mxu0
    %346 = vmatprep.mubr.f32.mxu0 0.0
    %v347 = vand.u32 %v61, 4294901760
    %v348 = vsub.f32 %v61, %v347
    %349 = vmatmul.mubr.f32.gmra.mxu0 %v348
    %v350 = vpop.f32.mrf.mxu0
    %v351 = vadd.f32 %v258, %v350
    %v352 = vpop.f32.mrf.mxu0
    %353 = vmatprep.mubr.f32.mxu0 0.0
    %v354 = vand.u32 %v64, 4294901760
    %v355 = vsub.f32 %v64, %v354
    %356 = vmatmul.mubr.f32.gmra.mxu0 %v355
    %v357 = vpop.f32.mrf.mxu0
    %v358 = vadd.f32 %v264, %v357
    %v359 = vpop.f32.mrf.mxu0
    %360 = vmatprep.mubr.f32.mxu0 0.0
    %v361 = vand.u32 %v67, 4294901760
    %v362 = vsub.f32 %v67, %v361
    %363 = vmatmul.mubr.f32.gmra.mxu0 %v362
    %v364 = vpop.f32.mrf.mxu0
    %v365 = vadd.f32 %v270, %v364
    %v366 = vpop.f32.mrf.mxu0
    %367 = vdwg.mxu0
    %368 = vmatprep.subr.mxu0 0.0
    %369 = vmatpush1.msra.mxu0 0.0
    %370 = vmatprep.subr.mxu0 0.0
    %371 = vmatpush1.msra.mxu0 0.0
    %372 = vmatprep.subr.mxu0 0.0
    %373 = vmatpush1.msra.mxu0 0.0
    %374 = vmatprep.subr.mxu0 0.0
    %375 = vmatpush1.msra.mxu0 0.0
    %376 = vmatprep.subr.mxu0 0.0
    %377 = vmatpush1.msra.mxu0 0.0
    %378 = vmatprep.subr.mxu0 0.0
    %379 = vmatpush1.msra.mxu0 0.0
    %380 = vmatprep.subr.mxu0 0.0
    %381 = vmatpush1.msra.mxu0 0.0
    %382 = vmatprep.subr.mxu0 0.0
    %383 = vmatpush1.msra.mxu0 0.0
    %384 = vmatprep.subr.mxu0 0.0
    %385 = vmatpush1.msra.mxu0 0.0
    %386 = vmatprep.subr.mxu0 0.0
    %387 = vmatpush1.msra.mxu0 0.0
    %388 = vmatprep.subr.mxu0 0.0
    %389 = vmatpush1.msra.mxu0 0.0
    %390 = vmatprep.subr.mxu0 0.0
    %391 = vmatpush1.msra.mxu0 0.0
    %392 = vmatprep.subr.mxu0 0.0
    %393 = vmatpush1.msra.mxu0 0.0
    %394 = vmatprep.subr.mxu0 0.0
    %395 = vmatpush1.msra.mxu0 0.0
    %396 = vmatprep.subr.mxu0 0.0
    %397 = vmatpush1.msra.mxu0 0.0
    %398 = vmatprep.subr.mxu0 0.0
    %v399 = vand.u32 %v71, 4294901760
    %400 = vmatpush1.msra.mxu0 %v399
    %401 = vmatprep.subr.mxu0 0.0
    %402 = vmatpush2.msra.mxu0 0.0
    %403 = vmatprep.subr.mxu0 0.0
    %404 = vmatpush2.msra.mxu0 0.0
    %405 = vmatprep.subr.mxu0 0.0
    %406 = vmatpush2.msra.mxu0 0.0
    %407 = vmatprep.subr.mxu0 0.0
    %408 = vmatpush2.msra.mxu0 0.0
    %409 = vmatprep.subr.mxu0 0.0
    %410 = vmatpush2.msra.mxu0 0.0
    %411 = vmatprep.subr.mxu0 0.0
    %412 = vmatpush2.msra.mxu0 0.0
    %413 = vmatprep.subr.mxu0 0.0
    %414 = vmatpush2.msra.mxu0 0.0
    %415 = vmatprep.subr.mxu0 0.0
    %416 = vmatpush2.msra.mxu0 0.0
    %417 = vmatprep.subr.mxu0 0.0
    %418 = vmatpush2.msra.mxu0 0.0
    %419 = vmatprep.subr.mxu0 0.0
    %420 = vmatpush2.msra.mxu0 0.0
    %421 = vmatprep.subr.mxu0 0.0
    %422 = vmatpush2.msra.mxu0 0.0
    %423 = vmatprep.subr.mxu0 0.0
    %424 = vmatpush2.msra.mxu0 0.0
    %425 = vmatprep.subr.mxu0 0.0
    %426 = vmatpush2.msra.mxu0 0.0
    %427 = vmatprep.subr.mxu0 0.0
    %428 = vmatpush2.msra.mxu0 0.0
    %429 = vmatprep.subr.mxu0 0.0
    %430 = vmatpush2.msra.mxu0 0.0
    %431 = vmatprep.subr.mxu0 0.0
    %432 = vmatpush2.msra.mxu0 0.0
    %433 = vmatprep.mubr.f32.mxu0 0.0
    %v434 = vand.u32 %v58, 4294901760
    %v435 = vsub.f32 %v58, %v434
    %v436 = vand.u32 %v435, 4294901760
    %437 = vmatmul.mubr.f32.gmra.mxu0 %v436
    %v438 = vpop.f32.mrf.mxu0
    %v439 = vadd.f32 %v344, %v438
    %v440 = vpop.f32.mrf.mxu0
    %441 = vmatprep.mubr.f32.mxu0 0.0
    %v442 = vand.u32 %v61, 4294901760
    %v443 = vsub.f32 %v61, %v442
    %v444 = vand.u32 %v443, 4294901760
    %445 = vmatmul.mubr.f32.gmra.mxu0 %v444
    %v446 = vpop.f32.mrf.mxu0
    %v447 = vadd.f32 %v351, %v446
    %v448 = vpop.f32.mrf.mxu0
    %449 = vmatprep.mubr.f32.mxu0 0.0
    %v450 = vand.u32 %v64, 4294901760
    %v451 = vsub.f32 %v64, %v450
    %v452 = vand.u32 %v451, 4294901760
    %453 = vmatmul.mubr.f32.gmra.mxu0 %v452
    %v454 = vpop.f32.mrf.mxu0
    %v455 = vadd.f32 %v358, %v454
    %v456 = vpop.f32.mrf.mxu0
    %457 = vmatprep.mubr.f32.mxu0 0.0
    %v458 = vand.u32 %v67, 4294901760
    %v459 = vsub.f32 %v67, %v458
    %v460 = vand.u32 %v459, 4294901760
    %461 = vmatmul.mubr.f32.gmra.mxu0 %v460
    %v462 = vpop.f32.mrf.mxu0
    %v463 = vadd.f32 %v365, %v462
    %v464 = vpop.f32.mrf.mxu0
    %465 = vdwg.mxu0
    %466 = vmatprep.subr.mxu0 0.0
    %467 = vmatpush1.msra.mxu0 0.0
    %468 = vmatprep.subr.mxu0 0.0
    %469 = vmatpush1.msra.mxu0 0.0
    %470 = vmatprep.subr.mxu0 0.0
    %471 = vmatpush1.msra.mxu0 0.0
    %472 = vmatprep.subr.mxu0 0.0
    %473 = vmatpush1.msra.mxu0 0.0
    %474 = vmatprep.subr.mxu0 0.0
    %475 = vmatpush1.msra.mxu0 0.0
    %476 = vmatprep.subr.mxu0 0.0
    %477 = vmatpush1.msra.mxu0 0.0
    %478 = vmatprep.subr.mxu0 0.0
    %479 = vmatpush1.msra.mxu0 0.0
    %480 = vmatprep.subr.mxu0 0.0
    %481 = vmatpush1.msra.mxu0 0.0
    %482 = vmatprep.subr.mxu0 0.0
    %483 = vmatpush1.msra.mxu0 0.0
    %484 = vmatprep.subr.mxu0 0.0
    %485 = vmatpush1.msra.mxu0 0.0
    %486 = vmatprep.subr.mxu0 0.0
    %487 = vmatpush1.msra.mxu0 0.0
    %488 = vmatprep.subr.mxu0 0.0
    %489 = vmatpush1.msra.mxu0 0.0
    %490 = vmatprep.subr.mxu0 0.0
    %491 = vmatpush1.msra.mxu0 0.0
    %492 = vmatprep.subr.mxu0 0.0
    %493 = vmatpush1.msra.mxu0 0.0
    %494 = vmatprep.subr.mxu0 0.0
    %495 = vmatpush1.msra.mxu0 0.0
    %496 = vmatprep.subr.mxu0 0.0
    %v497 = vand.u32 %v71, 4294901760
    %v498 = vsub.f32 %v71, %v497
    %v499 = vand.u32 %v498, 4294901760
    %500 = vmatpush1.msra.mxu0 %v499
    %501 = vmatprep.subr.mxu0 0.0
    %502 = vmatpush2.msra.mxu0 0.0
    %503 = vmatprep.subr.mxu0 0.0
    %504 = vmatpush2.msra.mxu0 0.0
    %505 = vmatprep.subr.mxu0 0.0
    %506 = vmatpush2.msra.mxu0 0.0
    %507 = vmatprep.subr.mxu0 0.0
    %508 = vmatpush2.msra.mxu0 0.0
    %509 = vmatprep.subr.mxu0 0.0
    %510 = vmatpush2.msra.mxu0 0.0
    %511 = vmatprep.subr.mxu0 0.0
    %512 = vmatpush2.msra.mxu0 0.0
    %513 = vmatprep.subr.mxu0 0.0
    %514 = vmatpush2.msra.mxu0 0.0
    %515 = vmatprep.subr.mxu0 0.0
    %516 = vmatpush2.msra.mxu0 0.0
    %517 = vmatprep.subr.mxu0 0.0
    %518 = vmatpush2.msra.mxu0 0.0
    %519 = vmatprep.subr.mxu0 0.0
    %520 = vmatpush2.msra.mxu0 0.0
    %521 = vmatprep.subr.mxu0 0.0
    %522 = vmatpush2.msra.mxu0 0.0
    %523 = vmatprep.subr.mxu0 0.0
    %524 = vmatpush2.msra.mxu0 0.0
    %525 = vmatprep.subr.mxu0 0.0
    %526 = vmatpush2.msra.mxu0 0.0
    %527 = vmatprep.subr.mxu0 0.0
    %528 = vmatpush2.msra.mxu0 0.0
    %529 = vmatprep.subr.mxu0 0.0
    %530 = vmatpush2.msra.mxu0 0.0
    %531 = vmatprep.subr.mxu0 0.0
    %532 = vmatpush2.msra.mxu0 0.0
    %533 = vmatprep.mubr.f32.mxu0 0.0
    %v534 = vand.u32 %v58, 4294901760
    %535 = vmatmul.mubr.f32.gmra.mxu0 %v534
    %v536 = vpop.f32.mrf.mxu0
    %v537 = vadd.f32 %v439, %v536
    %v538 = vpop.f32.mrf.mxu0
    %539 = vmatprep.mubr.f32.mxu0 0.0
    %v540 = vand.u32 %v61, 4294901760
    %541 = vmatmul.mubr.f32.gmra.mxu0 %v540
    %v542 = vpop.f32.mrf.mxu0
    %v543 = vadd.f32 %v447, %v542
    %v544 = vpop.f32.mrf.mxu0
    %545 = vmatprep.mubr.f32.mxu0 0.0
    %v546 = vand.u32 %v64, 4294901760
    %547 = vmatmul.mubr.f32.gmra.mxu0 %v546
    %v548 = vpop.f32.mrf.mxu0
    %v549 = vadd.f32 %v455, %v548
    %v550 = vpop.f32.mrf.mxu0
    %551 = vmatprep.mubr.f32.mxu0 0.0
    %v552 = vand.u32 %v67, 4294901760
    %553 = vmatmul.mubr.f32.gmra.mxu0 %v552
    %v554 = vpop.f32.mrf.mxu0
    %v555 = vadd.f32 %v463, %v554
    %v556 = vpop.f32.mrf.mxu0
    %557 = vdwg.mxu0
    %558 = vmatprep.subr.mxu0 0.0
    %559 = vmatpush1.msra.mxu0 0.0
    %560 = vmatprep.subr.mxu0 0.0
    %561 = vmatpush1.msra.mxu0 0.0
    %562 = vmatprep.subr.mxu0 0.0
    %563 = vmatpush1.msra.mxu0 0.0
    %564 = vmatprep.subr.mxu0 0.0
    %565 = vmatpush1.msra.mxu0 0.0
    %566 = vmatprep.subr.mxu0 0.0
    %567 = vmatpush1.msra.mxu0 0.0
    %568 = vmatprep.subr.mxu0 0.0
    %569 = vmatpush1.msra.mxu0 0.0
    %570 = vmatprep.subr.mxu0 0.0
    %571 = vmatpush1.msra.mxu0 0.0
    %572 = vmatprep.subr.mxu0 0.0
    %573 = vmatpush1.msra.mxu0 0.0
    %574 = vmatprep.subr.mxu0 0.0
    %575 = vmatpush1.msra.mxu0 0.0
    %576 = vmatprep.subr.mxu0 0.0
    %577 = vmatpush1.msra.mxu0 0.0
    %578 = vmatprep.subr.mxu0 0.0
    %579 = vmatpush1.msra.mxu0 0.0
    %580 = vmatprep.subr.mxu0 0.0
    %581 = vmatpush1.msra.mxu0 0.0
    %582 = vmatprep.subr.mxu0 0.0
    %583 = vmatpush1.msra.mxu0 0.0
    %584 = vmatprep.subr.mxu0 0.0
    %585 = vmatpush1.msra.mxu0 0.0
    %586 = vmatprep.subr.mxu0 0.0
    %587 = vmatpush1.msra.mxu0 0.0
    %588 = vmatprep.subr.mxu0 0.0
    %v589 = vand.u32 %v71, 4294901760
    %590 = vmatpush1.msra.mxu0 %v589
    %591 = vmatprep.subr.mxu0 0.0
    %592 = vmatpush2.msra.mxu0 0.0
    %593 = vmatprep.subr.mxu0 0.0
    %594 = vmatpush2.msra.mxu0 0.0
    %595 = vmatprep.subr.mxu0 0.0
    %596 = vmatpush2.msra.mxu0 0.0
    %597 = vmatprep.subr.mxu0 0.0
    %598 = vmatpush2.msra.mxu0 0.0
    %599 = vmatprep.subr.mxu0 0.0
    %600 = vmatpush2.msra.mxu0 0.0
    %601 = vmatprep.subr.mxu0 0.0
    %602 = vmatpush2.msra.mxu0 0.0
    %603 = vmatprep.subr.mxu0 0.0
    %604 = vmatpush2.msra.mxu0 0.0
    %605 = vmatprep.subr.mxu0 0.0
    %606 = vmatpush2.msra.mxu0 0.0
    %607 = vmatprep.subr.mxu0 0.0
    %608 = vmatpush2.msra.mxu0 0.0
    %609 = vmatprep.subr.mxu0 0.0
    %610 = vmatpush2.msra.mxu0 0.0
    %611 = vmatprep.subr.mxu0 0.0
    %612 = vmatpush2.msra.mxu0 0.0
    %613 = vmatprep.subr.mxu0 0.0
    %614 = vmatpush2.msra.mxu0 0.0
    %615 = vmatprep.subr.mxu0 0.0
    %616 = vmatpush2.msra.mxu0 0.0
    %617 = vmatprep.subr.mxu0 0.0
    %618 = vmatpush2.msra.mxu0 0.0
    %619 = vmatprep.subr.mxu0 0.0
    %620 = vmatpush2.msra.mxu0 0.0
    %621 = vmatprep.subr.mxu0 0.0
    %622 = vmatpush2.msra.mxu0 0.0
    %623 = vmatprep.mubr.f32.mxu0 0.0
    %v624 = vand.u32 %v58, 4294901760
    %625 = vmatmul.mubr.f32.gmra.mxu0 %v624
    %v626 = vpop.f32.mrf.mxu0
    %v627 = vadd.f32 %v537, %v626
    %v628 = vpop.f32.mrf.mxu0
    %629 = vmatprep.mubr.f32.mxu0 0.0
    %v630 = vand.u32 %v61, 4294901760
    %631 = vmatmul.mubr.f32.gmra.mxu0 %v630
    %v632 = vpop.f32.mrf.mxu0
    %v633 = vadd.f32 %v543, %v632
    %v634 = vpop.f32.mrf.mxu0
    %635 = vmatprep.mubr.f32.mxu0 0.0
    %v636 = vand.u32 %v64, 4294901760
    %637 = vmatmul.mubr.f32.gmra.mxu0 %v636
    %v638 = vpop.f32.mrf.mxu0
    %v639 = vadd.f32 %v549, %v638
    %v640 = vpop.f32.mrf.mxu0
    %641 = vmatprep.mubr.f32.mxu0 0.0
    %v642 = vand.u32 %v67, 4294901760
    %643 = vmatmul.mubr.f32.gmra.mxu0 %v642
    %v644 = vpop.f32.mrf.mxu0
    %v645 = vadd.f32 %v555, %v644
    %v646 = vpop.f32.mrf.mxu0
    %647 = vdwg.mxu0
    %v648 = vmax.f32 %v627, 0.0
    %v649 = vmax.f32 %v633, 0.0
    %v650 = vmax.f32 %v639, 0.0
    %v651 = vmax.f32 %v645, 0.0
    %v652 = vld [vmem:[%s3] sm:$0xff]
    %v653 = vld [vmem:[%s3 + $0x8] sm:$0xff]
    %v654 = vld [vmem:[%s4] sm:$0xff]
    %v655 = vld [vmem:[%s4 + $0x8] sm:$0xff]
    %657 = vset.pattern.permute.xlu0 0
    %658 = vperm.xlu0 %657, %v654
    %v659 = vpop.permute.xlu0 %658
    %662 = vset.pattern.permute.xlu0 0
    %663 = vperm.xlu0 %662, %v655
    %v664 = vpop.permute.xlu0 %663
    %vm666 = vcmask 261120
    %v668 = vsel %vm666, %v652, 0
    %v671 = vsel %vm666, %v653, 0
    %673 = vmatprep.subr.mxu0 0.0
    %674 = vmatpush1.msra.mxu0 0.0
    %675 = vmatprep.subr.mxu0 0.0
    %676 = vmatpush1.msra.mxu0 0.0
    %677 = vmatprep.subr.mxu0 0.0
    %678 = vmatpush1.msra.mxu0 0.0
    %679 = vmatprep.subr.mxu0 0.0
    %680 = vmatpush1.msra.mxu0 0.0
    %681 = vmatprep.subr.mxu0 0.0
    %682 = vmatpush1.msra.mxu0 0.0
    %683 = vmatprep.subr.mxu0 0.0
    %684 = vmatpush1.msra.mxu0 0.0
    %685 = vmatprep.subr.mxu0 0.0
    %686 = vmatpush1.msra.mxu0 0.0
    %687 = vmatprep.subr.mxu0 0.0
    %688 = vmatpush1.msra.mxu0 0.0
    %689 = vmatprep.subr.mxu0 0.0
    %690 = vmatpush1.msra.mxu0 0.0
    %691 = vmatprep.subr.mxu0 0.0
    %692 = vmatpush1.msra.mxu0 0.0
    %693 = vmatprep.subr.mxu0 0.0
    %694 = vmatpush1.msra.mxu0 0.0
    %695 = vmatprep.subr.mxu0 0.0
    %696 = vmatpush1.msra.mxu0 0.0
    %697 = vmatprep.subr.mxu0 0.0
    %v698 = vand.u32 %v651, 4294901760
    %699 = vmatpush1.msra.mxu0 %v698
    %700 = vmatprep.subr.mxu0 0.0
    %v701 = vand.u32 %v650, 4294901760
    %702 = vmatpush1.msra.mxu0 %v701
    %703 = vmatprep.subr.mxu0 0.0
    %v704 = vand.u32 %v649, 4294901760
    %705 = vmatpush1.msra.mxu0 %v704
    %706 = vmatprep.subr.mxu0 0.0
    %v707 = vand.u32 %v648, 4294901760
    %708 = vmatpush1.msra.mxu0 %v707
    %709 = vmatprep.subr.mxu0 0.0
    %710 = vmatpush2.msra.mxu0 0.0
    %711 = vmatprep.subr.mxu0 0.0
    %712 = vmatpush2.msra.mxu0 0.0
    %713 = vmatprep.subr.mxu0 0.0
    %714 = vmatpush2.msra.mxu0 0.0
    %715 = vmatprep.subr.mxu0 0.0
    %716 = vmatpush2.msra.mxu0 0.0
    %717 = vmatprep.subr.mxu0 0.0
    %718 = vmatpush2.msra.mxu0 0.0
    %719 = vmatprep.subr.mxu0 0.0
    %720 = vmatpush2.msra.mxu0 0.0
    %721 = vmatprep.subr.mxu0 0.0
    %722 = vmatpush2.msra.mxu0 0.0
    %723 = vmatprep.subr.mxu0 0.0
    %724 = vmatpush2.msra.mxu0 0.0
    %725 = vmatprep.subr.mxu0 0.0
    %726 = vmatpush2.msra.mxu0 0.0
    %727 = vmatprep.subr.mxu0 0.0
    %728 = vmatpush2.msra.mxu0 0.0
    %729 = vmatprep.subr.mxu0 0.0
    %730 = vmatpush2.msra.mxu0 0.0
    %731 = vmatprep.subr.mxu0 0.0
    %732 = vmatpush2.msra.mxu0 0.0
    %733 = vmatprep.subr.mxu0 0.0
    %734 = vmatpush2.msra.mxu0 0.0
    %735 = vmatprep.subr.mxu0 0.0
    %736 = vmatpush2.msra.mxu0 0.0
    %737 = vmatprep.subr.mxu0 0.0
    %738 = vmatpush2.msra.mxu0 0.0
    %739 = vmatprep.subr.mxu0 0.0
    %740 = vmatpush2.msra.mxu0 0.0
    %741 = vmatprep.mubr.f32.mxu0 0.0
    %v742 = vand.u32 %v668, 4294901760
    %v743 = vsub.f32 %v668, %v742
    %v744 = vand.u32 %v743, 4294901760
    %v745 = vsub.f32 %v743, %v744
    %v746 = vand.u32 %v745, 4294901760
    %747 = vmatmul.mubr.f32.gmra.mxu0 %v746
    %v748 = vpop.f32.mrf.mxu0
    %v749 = vadd.f32 %v659, %v748
    %v750 = vpop.f32.mrf.mxu0
    %751 = vmatprep.mubr.f32.mxu0 0.0
    %v752 = vand.u32 %v671, 4294901760
    %v753 = vsub.f32 %v671, %v752
    %v754 = vand.u32 %v753, 4294901760
    %v755 = vsub.f32 %v753, %v754
    %v756 = vand.u32 %v755, 4294901760
    %757 = vmatmul.mubr.f32.gmra.mxu0 %v756
    %v758 = vpop.f32.mrf.mxu0
    %v759 = vadd.f32 %v664, %v758
    %v760 = vpop.f32.mrf.mxu0
    %761 = vdwg.mxu0
    %762 = vmatprep.subr.mxu0 0.0
    %763 = vmatpush1.msra.mxu0 0.0
    %764 = vmatprep.subr.mxu0 0.0
    %765 = vmatpush1.msra.mxu0 0.0
    %766 = vmatprep.subr.mxu0 0.0
    %767 = vmatpush1.msra.mxu0 0.0
    %768 = vmatprep.subr.mxu0 0.0
    %769 = vmatpush1.msra.mxu0 0.0
    %770 = vmatprep.subr.mxu0 0.0
    %771 = vmatpush1.msra.mxu0 0.0
    %772 = vmatprep.subr.mxu0 0.0
    %773 = vmatpush1.msra.mxu0 0.0
    %774 = vmatprep.subr.mxu0 0.0
    %775 = vmatpush1.msra.mxu0 0.0
    %776 = vmatprep.subr.mxu0 0.0
    %777 = vmatpush1.msra.mxu0 0.0
    %778 = vmatprep.subr.mxu0 0.0
    %779 = vmatpush1.msra.mxu0 0.0
    %780 = vmatprep.subr.mxu0 0.0
    %781 = vmatpush1.msra.mxu0 0.0
    %782 = vmatprep.subr.mxu0 0.0
    %783 = vmatpush1.msra.mxu0 0.0
    %784 = vmatprep.subr.mxu0 0.0
    %785 = vmatpush1.msra.mxu0 0.0
    %786 = vmatprep.subr.mxu0 0.0
    %v787 = vand.u32 %v651, 4294901760
    %v788 = vsub.f32 %v651, %v787
    %v789 = vand.u32 %v788, 4294901760
    %v790 = vsub.f32 %v788, %v789
    %v791 = vand.u32 %v790, 4294901760
    %792 = vmatpush1.msra.mxu0 %v791
    %793 = vmatprep.subr.mxu0 0.0
    %v794 = vand.u32 %v650, 4294901760
    %v795 = vsub.f32 %v650, %v794
    %v796 = vand.u32 %v795, 4294901760
    %v797 = vsub.f32 %v795, %v796
    %v798 = vand.u32 %v797, 4294901760
    %799 = vmatpush1.msra.mxu0 %v798
    %800 = vmatprep.subr.mxu0 0.0
    %v801 = vand.u32 %v649, 4294901760
    %v802 = vsub.f32 %v649, %v801
    %v803 = vand.u32 %v802, 4294901760
    %v804 = vsub.f32 %v802, %v803
    %v805 = vand.u32 %v804, 4294901760
    %806 = vmatpush1.msra.mxu0 %v805
    %807 = vmatprep.subr.mxu0 0.0
    %v808 = vand.u32 %v648, 4294901760
    %v809 = vsub.f32 %v648, %v808
    %v810 = vand.u32 %v809, 4294901760
    %v811 = vsub.f32 %v809, %v810
    %v812 = vand.u32 %v811, 4294901760
    %813 = vmatpush1.msra.mxu0 %v812
    %814 = vmatprep.subr.mxu0 0.0
    %815 = vmatpush2.msra.mxu0 0.0
    %816 = vmatprep.subr.mxu0 0.0
    %817 = vmatpush2.msra.mxu0 0.0
    %818 = vmatprep.subr.mxu0 0.0
    %819 = vmatpush2.msra.mxu0 0.0
    %820 = vmatprep.subr.mxu0 0.0
    %821 = vmatpush2.msra.mxu0 0.0
    %822 = vmatprep.subr.mxu0 0.0
    %823 = vmatpush2.msra.mxu0 0.0
    %824 = vmatprep.subr.mxu0 0.0
    %825 = vmatpush2.msra.mxu0 0.0
    %826 = vmatprep.subr.mxu0 0.0
    %827 = vmatpush2.msra.mxu0 0.0
    %828 = vmatprep.subr.mxu0 0.0
    %829 = vmatpush2.msra.mxu0 0.0
    %830 = vmatprep.subr.mxu0 0.0
    %831 = vmatpush2.msra.mxu0 0.0
    %832 = vmatprep.subr.mxu0 0.0
    %833 = vmatpush2.msra.mxu0 0.0
    %834 = vmatprep.subr.mxu0 0.0
    %835 = vmatpush2.msra.mxu0 0.0
    %836 = vmatprep.subr.mxu0 0.0
    %837 = vmatpush2.msra.mxu0 0.0
    %838 = vmatprep.subr.mxu0 0.0
    %839 = vmatpush2.msra.mxu0 0.0
    %840 = vmatprep.subr.mxu0 0.0
    %841 = vmatpush2.msra.mxu0 0.0
    %842 = vmatprep.subr.mxu0 0.0
    %843 = vmatpush2.msra.mxu0 0.0
    %844 = vmatprep.subr.mxu0 0.0
    %845 = vmatpush2.msra.mxu0 0.0
    %846 = vmatprep.mubr.f32.mxu0 0.0
    %v847 = vand.u32 %v668, 4294901760
    %848 = vmatmul.mubr.f32.gmra.mxu0 %v847
    %v849 = vpop.f32.mrf.mxu0
    %v850 = vadd.f32 %v749, %v849
    %v851 = vpop.f32.mrf.mxu0
    %852 = vmatprep.mubr.f32.mxu0 0.0
    %v853 = vand.u32 %v671, 4294901760
    %854 = vmatmul.mubr.f32.gmra.mxu0 %v853
    %v855 = vpop.f32.mrf.mxu0
    %v856 = vadd.f32 %v759, %v855
    %v857 = vpop.f32.mrf.mxu0
    %858 = vdwg.mxu0
    %859 = vmatprep.subr.mxu0 0.0
    %860 = vmatpush1.msra.mxu0 0.0
    %861 = vmatprep.subr.mxu0 0.0
    %862 = vmatpush1.msra.mxu0 0.0
    %863 = vmatprep.subr.mxu0 0.0
    %864 = vmatpush1.msra.mxu0 0.0
    %865 = vmatprep.subr.mxu0 0.0
    %866 = vmatpush1.msra.mxu0 0.0
    %867 = vmatprep.subr.mxu0 0.0
    %868 = vmatpush1.msra.mxu0 0.0
    %869 = vmatprep.subr.mxu0 0.0
    %870 = vmatpush1.msra.mxu0 0.0
    %871 = vmatprep.subr.mxu0 0.0
    %872 = vmatpush1.msra.mxu0 0.0
    %873 = vmatprep.subr.mxu0 0.0
    %874 = vmatpush1.msra.mxu0 0.0
    %875 = vmatprep.subr.mxu0 0.0
    %876 = vmatpush1.msra.mxu0 0.0
    %877 = vmatprep.subr.mxu0 0.0
    %878 = vmatpush1.msra.mxu0 0.0
    %879 = vmatprep.subr.mxu0 0.0
    %880 = vmatpush1.msra.mxu0 0.0
    %881 = vmatprep.subr.mxu0 0.0
    %882 = vmatpush1.msra.mxu0 0.0
    %883 = vmatprep.subr.mxu0 0.0
    %v884 = vand.u32 %v651, 4294901760
    %v885 = vsub.f32 %v651, %v884
    %886 = vmatpush1.msra.mxu0 %v885
    %887 = vmatprep.subr.mxu0 0.0
    %v888 = vand.u32 %v650, 4294901760
    %v889 = vsub.f32 %v650, %v888
    %890 = vmatpush1.msra.mxu0 %v889
    %891 = vmatprep.subr.mxu0 0.0
    %v892 = vand.u32 %v649, 4294901760
    %v893 = vsub.f32 %v649, %v892
    %894 = vmatpush1.msra.mxu0 %v893
    %895 = vmatprep.subr.mxu0 0.0
    %v896 = vand.u32 %v648, 4294901760
    %v897 = vsub.f32 %v648, %v896
    %898 = vmatpush1.msra.mxu0 %v897
    %899 = vmatprep.subr.mxu0 0.0
    %900 = vmatpush2.msra.mxu0 0.0
    %901 = vmatprep.subr.mxu0 0.0
    %902 = vmatpush2.msra.mxu0 0.0
    %903 = vmatprep.subr.mxu0 0.0
    %904 = vmatpush2.msra.mxu0 0.0
    %905 = vmatprep.subr.mxu0 0.0
    %906 = vmatpush2.msra.mxu0 0.0
    %907 = vmatprep.subr.mxu0 0.0
    %908 = vmatpush2.msra.mxu0 0.0
    %909 = vmatprep.subr.mxu0 0.0
    %910 = vmatpush2.msra.mxu0 0.0
    %911 = vmatprep.subr.mxu0 0.0
    %912 = vmatpush2.msra.mxu0 0.0
    %913 = vmatprep.subr.mxu0 0.0
    %914 = vmatpush2.msra.mxu0 0.0
    %915 = vmatprep.subr.mxu0 0.0
    %916 = vmatpush2.msra.mxu0 0.0
    %917 = vmatprep.subr.mxu0 0.0
    %918 = vmatpush2.msra.mxu0 0.0
    %919 = vmatprep.subr.mxu0 0.0
    %920 = vmatpush2.msra.mxu0 0.0
    %921 = vmatprep.subr.mxu0 0.0
    %922 = vmatpush2.msra.mxu0 0.0
    %923 = vmatprep.subr.mxu0 0.0
    %924 = vmatpush2.msra.mxu0 0.0
    %925 = vmatprep.subr.mxu0 0.0
    %926 = vmatpush2.msra.mxu0 0.0
    %927 = vmatprep.subr.mxu0 0.0
    %928 = vmatpush2.msra.mxu0 0.0
    %929 = vmatprep.subr.mxu0 0.0
    %930 = vmatpush2.msra.mxu0 0.0
    %931 = vmatprep.mubr.f32.mxu0 0.0
    %v932 = vand.u32 %v668, 4294901760
    %v933 = vsub.f32 %v668, %v932
    %934 = vmatmul.mubr.f32.gmra.mxu0 %v933
    %v935 = vpop.f32.mrf.mxu0
    %v936 = vadd.f32 %v850, %v935
    %v937 = vpop.f32.mrf.mxu0
    %938 = vmatprep.mubr.f32.mxu0 0.0
    %v939 = vand.u32 %v671, 4294901760
    %v940 = vsub.f32 %v671, %v939
    %941 = vmatmul.mubr.f32.gmra.mxu0 %v940
    %v942 = vpop.f32.mrf.mxu0
    %v943 = vadd.f32 %v856, %v942
    %v944 = vpop.f32.mrf.mxu0
    %945 = vdwg.mxu0
    %946 = vmatprep.subr.mxu0 0.0
    %947 = vmatpush1.msra.mxu0 0.0
    %948 = vmatprep.subr.mxu0 0.0
    %949 = vmatpush1.msra.mxu0 0.0
    %950 = vmatprep.subr.mxu0 0.0
    %951 = vmatpush1.msra.mxu0 0.0
    %952 = vmatprep.subr.mxu0 0.0
    %953 = vmatpush1.msra.mxu0 0.0
    %954 = vmatprep.subr.mxu0 0.0
    %955 = vmatpush1.msra.mxu0 0.0
    %956 = vmatprep.subr.mxu0 0.0
    %957 = vmatpush1.msra.mxu0 0.0
    %958 = vmatprep.subr.mxu0 0.0
    %959 = vmatpush1.msra.mxu0 0.0
    %960 = vmatprep.subr.mxu0 0.0
    %961 = vmatpush1.msra.mxu0 0.0
    %962 = vmatprep.subr.mxu0 0.0
    %963 = vmatpush1.msra.mxu0 0.0
    %964 = vmatprep.subr.mxu0 0.0
    %965 = vmatpush1.msra.mxu0 0.0
    %966 = vmatprep.subr.mxu0 0.0
    %967 = vmatpush1.msra.mxu0 0.0
    %968 = vmatprep.subr.mxu0 0.0
    %969 = vmatpush1.msra.mxu0 0.0
    %970 = vmatprep.subr.mxu0 0.0
    %v971 = vand.u32 %v651, 4294901760
    %972 = vmatpush1.msra.mxu0 %v971
    %973 = vmatprep.subr.mxu0 0.0
    %v974 = vand.u32 %v650, 4294901760
    %975 = vmatpush1.msra.mxu0 %v974
    %976 = vmatprep.subr.mxu0 0.0
    %v977 = vand.u32 %v649, 4294901760
    %978 = vmatpush1.msra.mxu0 %v977
    %979 = vmatprep.subr.mxu0 0.0
    %v980 = vand.u32 %v648, 4294901760
    %981 = vmatpush1.msra.mxu0 %v980
    %982 = vmatprep.subr.mxu0 0.0
    %983 = vmatpush2.msra.mxu0 0.0
    %984 = vmatprep.subr.mxu0 0.0
    %985 = vmatpush2.msra.mxu0 0.0
    %986 = vmatprep.subr.mxu0 0.0
    %987 = vmatpush2.msra.mxu0 0.0
    %988 = vmatprep.subr.mxu0 0.0
    %989 = vmatpush2.msra.mxu0 0.0
    %990 = vmatprep.subr.mxu0 0.0
    %991 = vmatpush2.msra.mxu0 0.0
    %992 = vmatprep.subr.mxu0 0.0
    %993 = vmatpush2.msra.mxu0 0.0
    %994 = vmatprep.subr.mxu0 0.0
    %995 = vmatpush2.msra.mxu0 0.0
    %996 = vmatprep.subr.mxu0 0.0
    %997 = vmatpush2.msra.mxu0 0.0
    %998 = vmatprep.subr.mxu0 0.0
    %999 = vmatpush2.msra.mxu0 0.0
    %1000 = vmatprep.subr.mxu0 0.0
    %1001 = vmatpush2.msra.mxu0 0.0
    %1002 = vmatprep.subr.mxu0 0.0
    %1003 = vmatpush2.msra.mxu0 0.0
    %1004 = vmatprep.subr.mxu0 0.0
    %1005 = vmatpush2.msra.mxu0 0.0
    %1006 = vmatprep.subr.mxu0 0.0
    %1007 = vmatpush2.msra.mxu0 0.0
    %1008 = vmatprep.subr.mxu0 0.0
    %1009 = vmatpush2.msra.mxu0 0.0
    %1010 = vmatprep.subr.mxu0 0.0
    %1011 = vmatpush2.msra.mxu0 0.0
    %1012 = vmatprep.subr.mxu0 0.0
    %1013 = vmatpush2.msra.mxu0 0.0
    %1014 = vmatprep.mubr.f32.mxu0 0.0
    %v1015 = vand.u32 %v668, 4294901760
    %v1016 = vsub.f32 %v668, %v1015
    %v1017 = vand.u32 %v1016, 4294901760
    %1018 = vmatmul.mubr.f32.gmra.mxu0 %v1017
    %v1019 = vpop.f32.mrf.mxu0
    %v1020 = vadd.f32 %v936, %v1019
    %v1021 = vpop.f32.mrf.mxu0
    %1022 = vmatprep.mubr.f32.mxu0 0.0
    %v1023 = vand.u32 %v671, 4294901760
    %v1024 = vsub.f32 %v671, %v1023
    %v1025 = vand.u32 %v1024, 4294901760
    %1026 = vmatmul.mubr.f32.gmra.mxu0 %v1025
    %v1027 = vpop.f32.mrf.mxu0
    %v1028 = vadd.f32 %v943, %v1027
    %v1029 = vpop.f32.mrf.mxu0
    %1030 = vdwg.mxu0
    %1031 = vmatprep.subr.mxu0 0.0
    %1032 = vmatpush1.msra.mxu0 0.0
    %1033 = vmatprep.subr.mxu0 0.0
    %1034 = vmatpush1.msra.mxu0 0.0
    %1035 = vmatprep.subr.mxu0 0.0
    %1036 = vmatpush1.msra.mxu0 0.0
    %1037 = vmatprep.subr.mxu0 0.0
    %1038 = vmatpush1.msra.mxu0 0.0
    %1039 = vmatprep.subr.mxu0 0.0
    %1040 = vmatpush1.msra.mxu0 0.0
    %1041 = vmatprep.subr.mxu0 0.0
    %1042 = vmatpush1.msra.mxu0 0.0
    %1043 = vmatprep.subr.mxu0 0.0
    %1044 = vmatpush1.msra.mxu0 0.0
    %1045 = vmatprep.subr.mxu0 0.0
    %1046 = vmatpush1.msra.mxu0 0.0
    %1047 = vmatprep.subr.mxu0 0.0
    %1048 = vmatpush1.msra.mxu0 0.0
    %1049 = vmatprep.subr.mxu0 0.0
    %1050 = vmatpush1.msra.mxu0 0.0
    %1051 = vmatprep.subr.mxu0 0.0
    %1052 = vmatpush1.msra.mxu0 0.0
    %1053 = vmatprep.subr.mxu0 0.0
    %1054 = vmatpush1.msra.mxu0 0.0
    %1055 = vmatprep.subr.mxu0 0.0
    %v1056 = vand.u32 %v651, 4294901760
    %v1057 = vsub.f32 %v651, %v1056
    %v1058 = vand.u32 %v1057, 4294901760
    %1059 = vmatpush1.msra.mxu0 %v1058
    %1060 = vmatprep.subr.mxu0 0.0
    %v1061 = vand.u32 %v650, 4294901760
    %v1062 = vsub.f32 %v650, %v1061
    %v1063 = vand.u32 %v1062, 4294901760
    %1064 = vmatpush1.msra.mxu0 %v1063
    %1065 = vmatprep.subr.mxu0 0.0
    %v1066 = vand.u32 %v649, 4294901760
    %v1067 = vsub.f32 %v649, %v1066
    %v1068 = vand.u32 %v1067, 4294901760
    %1069 = vmatpush1.msra.mxu0 %v1068
    %1070 = vmatprep.subr.mxu0 0.0
    %v1071 = vand.u32 %v648, 4294901760
    %v1072 = vsub.f32 %v648, %v1071
    %v1073 = vand.u32 %v1072, 4294901760
    %1074 = vmatpush1.msra.mxu0 %v1073
    %1075 = vmatprep.subr.mxu0 0.0
    %1076 = vmatpush2.msra.mxu0 0.0
    %1077 = vmatprep.subr.mxu0 0.0
    %1078 = vmatpush2.msra.mxu0 0.0
    %1079 = vmatprep.subr.mxu0 0.0
    %1080 = vmatpush2.msra.mxu0 0.0
    %1081 = vmatprep.subr.mxu0 0.0
    %1082 = vmatpush2.msra.mxu0 0.0
    %1083 = vmatprep.subr.mxu0 0.0
    %1084 = vmatpush2.msra.mxu0 0.0
    %1085 = vmatprep.subr.mxu0 0.0
    %1086 = vmatpush2.msra.mxu0 0.0
    %1087 = vmatprep.subr.mxu0 0.0
    %1088 = vmatpush2.msra.mxu0 0.0
    %1089 = vmatprep.subr.mxu0 0.0
    %1090 = vmatpush2.msra.mxu0 0.0
    %1091 = vmatprep.subr.mxu0 0.0
    %1092 = vmatpush2.msra.mxu0 0.0
    %1093 = vmatprep.subr.mxu0 0.0
    %1094 = vmatpush2.msra.mxu0 0.0
    %1095 = vmatprep.subr.mxu0 0.0
    %1096 = vmatpush2.msra.mxu0 0.0
    %1097 = vmatprep.subr.mxu0 0.0
    %1098 = vmatpush2.msra.mxu0 0.0
    %1099 = vmatprep.subr.mxu0 0.0
    %1100 = vmatpush2.msra.mxu0 0.0
    %1101 = vmatprep.subr.mxu0 0.0
    %1102 = vmatpush2.msra.mxu0 0.0
    %1103 = vmatprep.subr.mxu0 0.0
    %1104 = vmatpush2.msra.mxu0 0.0
    %1105 = vmatprep.subr.mxu0 0.0
    %1106 = vmatpush2.msra.mxu0 0.0
    %1107 = vmatprep.mubr.f32.mxu0 0.0
    %v1108 = vand.u32 %v668, 4294901760
    %1109 = vmatmul.mubr.f32.gmra.mxu0 %v1108
    %v1110 = vpop.f32.mrf.mxu0
    %v1111 = vadd.f32 %v1020, %v1110
    %v1112 = vpop.f32.mrf.mxu0
    %1113 = vmatprep.mubr.f32.mxu0 0.0
    %v1114 = vand.u32 %v671, 4294901760
    %1115 = vmatmul.mubr.f32.gmra.mxu0 %v1114
    %v1116 = vpop.f32.mrf.mxu0
    %v1117 = vadd.f32 %v1028, %v1116
    %v1118 = vpop.f32.mrf.mxu0
    %1119 = vdwg.mxu0
    %1120 = vmatprep.subr.mxu0 0.0
    %1121 = vmatpush1.msra.mxu0 0.0
    %1122 = vmatprep.subr.mxu0 0.0
    %1123 = vmatpush1.msra.mxu0 0.0
    %1124 = vmatprep.subr.mxu0 0.0
    %1125 = vmatpush1.msra.mxu0 0.0
    %1126 = vmatprep.subr.mxu0 0.0
    %1127 = vmatpush1.msra.mxu0 0.0
    %1128 = vmatprep.subr.mxu0 0.0
    %1129 = vmatpush1.msra.mxu0 0.0
    %1130 = vmatprep.subr.mxu0 0.0
    %1131 = vmatpush1.msra.mxu0 0.0
    %1132 = vmatprep.subr.mxu0 0.0
    %1133 = vmatpush1.msra.mxu0 0.0
    %1134 = vmatprep.subr.mxu0 0.0
    %1135 = vmatpush1.msra.mxu0 0.0
    %1136 = vmatprep.subr.mxu0 0.0
    %1137 = vmatpush1.msra.mxu0 0.0
    %1138 = vmatprep.subr.mxu0 0.0
    %1139 = vmatpush1.msra.mxu0 0.0
    %1140 = vmatprep.subr.mxu0 0.0
    %1141 = vmatpush1.msra.mxu0 0.0
    %1142 = vmatprep.subr.mxu0 0.0
    %1143 = vmatpush1.msra.mxu0 0.0
    %1144 = vmatprep.subr.mxu0 0.0
    %v1145 = vand.u32 %v651, 4294901760
    %1146 = vmatpush1.msra.mxu0 %v1145
    %1147 = vmatprep.subr.mxu0 0.0
    %v1148 = vand.u32 %v650, 4294901760
    %1149 = vmatpush1.msra.mxu0 %v1148
    %1150 = vmatprep.subr.mxu0 0.0
    %v1151 = vand.u32 %v649, 4294901760
    %1152 = vmatpush1.msra.mxu0 %v1151
    %1153 = vmatprep.subr.mxu0 0.0
    %v1154 = vand.u32 %v648, 4294901760
    %1155 = vmatpush1.msra.mxu0 %v1154
    %1156 = vmatprep.subr.mxu0 0.0
    %1157 = vmatpush2.msra.mxu0 0.0
    %1158 = vmatprep.subr.mxu0 0.0
    %1159 = vmatpush2.msra.mxu0 0.0
    %1160 = vmatprep.subr.mxu0 0.0
    %1161 = vmatpush2.msra.mxu0 0.0
    %1162 = vmatprep.subr.mxu0 0.0
    %1163 = vmatpush2.msra.mxu0 0.0
    %1164 = vmatprep.subr.mxu0 0.0
    %1165 = vmatpush2.msra.mxu0 0.0
    %1166 = vmatprep.subr.mxu0 0.0
    %1167 = vmatpush2.msra.mxu0 0.0
    %1168 = vmatprep.subr.mxu0 0.0
    %1169 = vmatpush2.msra.mxu0 0.0
    %1170 = vmatprep.subr.mxu0 0.0
    %1171 = vmatpush2.msra.mxu0 0.0
    %1172 = vmatprep.subr.mxu0 0.0
    %1173 = vmatpush2.msra.mxu0 0.0
    %1174 = vmatprep.subr.mxu0 0.0
    %1175 = vmatpush2.msra.mxu0 0.0
    %1176 = vmatprep.subr.mxu0 0.0
    %1177 = vmatpush2.msra.mxu0 0.0
    %1178 = vmatprep.subr.mxu0 0.0
    %1179 = vmatpush2.msra.mxu0 0.0
    %1180 = vmatprep.subr.mxu0 0.0
    %1181 = vmatpush2.msra.mxu0 0.0
    %1182 = vmatprep.subr.mxu0 0.0
    %1183 = vmatpush2.msra.mxu0 0.0
    %1184 = vmatprep.subr.mxu0 0.0
    %1185 = vmatpush2.msra.mxu0 0.0
    %1186 = vmatprep.subr.mxu0 0.0
    %1187 = vmatpush2.msra.mxu0 0.0
    %1188 = vmatprep.mubr.f32.mxu0 0.0
    %v1189 = vand.u32 %v668, 4294901760
    %1190 = vmatmul.mubr.f32.gmra.mxu0 %v1189
    %v1191 = vpop.f32.mrf.mxu0
    %v1192 = vadd.f32 %v1111, %v1191
    %v1193 = vpop.f32.mrf.mxu0
    %1194 = vmatprep.mubr.f32.mxu0 0.0
    %v1195 = vand.u32 %v671, 4294901760
    %1196 = vmatmul.mubr.f32.gmra.mxu0 %v1195
    %v1197 = vpop.f32.mrf.mxu0
    %v1198 = vadd.f32 %v1117, %v1197
    %v1199 = vpop.f32.mrf.mxu0
    %1200 = vdwg.mxu0
    %v1201 = vmax.f32 %v1192, 0.0
    %v1202 = vmax.f32 %v1198, 0.0
    %v1203 = vld [vmem:[%s5] sm:$0x3]
    %v1204 = vld [vmem:[%s6] sm:$0x3]
    %1206 = vset.pattern.permute.xlu0 0
    %1207 = vperm.xlu0 %1206, %v1204
    %v1208 = vpop.permute.xlu0 %1207
    %vm1210 = vcmask 130048
    %v1212 = vsel %vm1210, %v1203, 0
    %1214 = vmatprep.subr.mxu0 0.0
    %1215 = vmatpush1.msra.mxu0 0.0
    %1216 = vmatprep.subr.mxu0 0.0
    %1217 = vmatpush1.msra.mxu0 0.0
    %1218 = vmatprep.subr.mxu0 0.0
    %1219 = vmatpush1.msra.mxu0 0.0
    %1220 = vmatprep.subr.mxu0 0.0
    %1221 = vmatpush1.msra.mxu0 0.0
    %1222 = vmatprep.subr.mxu0 0.0
    %1223 = vmatpush1.msra.mxu0 0.0
    %1224 = vmatprep.subr.mxu0 0.0
    %1225 = vmatpush1.msra.mxu0 0.0
    %1226 = vmatprep.subr.mxu0 0.0
    %1227 = vmatpush1.msra.mxu0 0.0
    %1228 = vmatprep.subr.mxu0 0.0
    %1229 = vmatpush1.msra.mxu0 0.0
    %1230 = vmatprep.subr.mxu0 0.0
    %1231 = vmatpush1.msra.mxu0 0.0
    %1232 = vmatprep.subr.mxu0 0.0
    %1233 = vmatpush1.msra.mxu0 0.0
    %1234 = vmatprep.subr.mxu0 0.0
    %1235 = vmatpush1.msra.mxu0 0.0
    %1236 = vmatprep.subr.mxu0 0.0
    %1237 = vmatpush1.msra.mxu0 0.0
    %1238 = vmatprep.subr.mxu0 0.0
    %1239 = vmatpush1.msra.mxu0 0.0
    %1240 = vmatprep.subr.mxu0 0.0
    %1241 = vmatpush1.msra.mxu0 0.0
    %1242 = vmatprep.subr.mxu0 0.0
    %v1243 = vand.u32 %v1202, 4294901760
    %1244 = vmatpush1.msra.mxu0 %v1243
    %1245 = vmatprep.subr.mxu0 0.0
    %v1246 = vand.u32 %v1201, 4294901760
    %1247 = vmatpush1.msra.mxu0 %v1246
    %1248 = vmatprep.subr.mxu0 0.0
    %1249 = vmatpush2.msra.mxu0 0.0
    %1250 = vmatprep.subr.mxu0 0.0
    %1251 = vmatpush2.msra.mxu0 0.0
    %1252 = vmatprep.subr.mxu0 0.0
    %1253 = vmatpush2.msra.mxu0 0.0
    %1254 = vmatprep.subr.mxu0 0.0
    %1255 = vmatpush2.msra.mxu0 0.0
    %1256 = vmatprep.subr.mxu0 0.0
    %1257 = vmatpush2.msra.mxu0 0.0
    %1258 = vmatprep.subr.mxu0 0.0
    %1259 = vmatpush2.msra.mxu0 0.0
    %1260 = vmatprep.subr.mxu0 0.0
    %1261 = vmatpush2.msra.mxu0 0.0
    %1262 = vmatprep.subr.mxu0 0.0
    %1263 = vmatpush2.msra.mxu0 0.0
    %1264 = vmatprep.subr.mxu0 0.0
    %1265 = vmatpush2.msra.mxu0 0.0
    %1266 = vmatprep.subr.mxu0 0.0
    %1267 = vmatpush2.msra.mxu0 0.0
    %1268 = vmatprep.subr.mxu0 0.0
    %1269 = vmatpush2.msra.mxu0 0.0
    %1270 = vmatprep.subr.mxu0 0.0
    %1271 = vmatpush2.msra.mxu0 0.0
    %1272 = vmatprep.subr.mxu0 0.0
    %1273 = vmatpush2.msra.mxu0 0.0
    %1274 = vmatprep.subr.mxu0 0.0
    %1275 = vmatpush2.msra.mxu0 0.0
    %1276 = vmatprep.subr.mxu0 0.0
    %1277 = vmatpush2.msra.mxu0 0.0
    %1278 = vmatprep.subr.mxu0 0.0
    %1279 = vmatpush2.msra.mxu0 0.0
    %1280 = vmatprep.mubr.f32.mxu0 0.0
    %v1281 = vand.u32 %v1212, 4294901760
    %v1282 = vsub.f32 %v1212, %v1281
    %v1283 = vand.u32 %v1282, 4294901760
    %v1284 = vsub.f32 %v1282, %v1283
    %v1285 = vand.u32 %v1284, 4294901760
    %1286 = vmatmul.mubr.f32.gmra.mxu0 %v1285
    %v1287 = vpop.f32.mrf.mxu0
    %v1288 = vadd.f32 %v1208, %v1287
    %v1289 = vpop.f32.mrf.mxu0
    %1290 = vdwg.mxu0
    %1291 = vmatprep.subr.mxu0 0.0
    %1292 = vmatpush1.msra.mxu0 0.0
    %1293 = vmatprep.subr.mxu0 0.0
    %1294 = vmatpush1.msra.mxu0 0.0
    %1295 = vmatprep.subr.mxu0 0.0
    %1296 = vmatpush1.msra.mxu0 0.0
    %1297 = vmatprep.subr.mxu0 0.0
    %1298 = vmatpush1.msra.mxu0 0.0
    %1299 = vmatprep.subr.mxu0 0.0
    %1300 = vmatpush1.msra.mxu0 0.0
    %1301 = vmatprep.subr.mxu0 0.0
    %1302 = vmatpush1.msra.mxu0 0.0
    %1303 = vmatprep.subr.mxu0 0.0
    %1304 = vmatpush1.msra.mxu0 0.0
    %1305 = vmatprep.subr.mxu0 0.0
    %1306 = vmatpush1.msra.mxu0 0.0
    %1307 = vmatprep.subr.mxu0 0.0
    %1308 = vmatpush1.msra.mxu0 0.0
    %1309 = vmatprep.subr.mxu0 0.0
    %1310 = vmatpush1.msra.mxu0 0.0
    %1311 = vmatprep.subr.mxu0 0.0
    %1312 = vmatpush1.msra.mxu0 0.0
    %1313 = vmatprep.subr.mxu0 0.0
    %1314 = vmatpush1.msra.mxu0 0.0
    %1315 = vmatprep.subr.mxu0 0.0
    %1316 = vmatpush1.msra.mxu0 0.0
    %1317 = vmatprep.subr.mxu0 0.0
    %1318 = vmatpush1.msra.mxu0 0.0
    %1319 = vmatprep.subr.mxu0 0.0
    %v1320 = vand.u32 %v1202, 4294901760
    %v1321 = vsub.f32 %v1202, %v1320
    %v1322 = vand.u32 %v1321, 4294901760
    %v1323 = vsub.f32 %v1321, %v1322
    %v1324 = vand.u32 %v1323, 4294901760
    %1325 = vmatpush1.msra.mxu0 %v1324
    %1326 = vmatprep.subr.mxu0 0.0
    %v1327 = vand.u32 %v1201, 4294901760
    %v1328 = vsub.f32 %v1201, %v1327
    %v1329 = vand.u32 %v1328, 4294901760
    %v1330 = vsub.f32 %v1328, %v1329
    %v1331 = vand.u32 %v1330, 4294901760
    %1332 = vmatpush1.msra.mxu0 %v1331
    %1333 = vmatprep.subr.mxu0 0.0
    %1334 = vmatpush2.msra.mxu0 0.0
    %1335 = vmatprep.subr.mxu0 0.0
    %1336 = vmatpush2.msra.mxu0 0.0
    %1337 = vmatprep.subr.mxu0 0.0
    %1338 = vmatpush2.msra.mxu0 0.0
    %1339 = vmatprep.subr.mxu0 0.0
    %1340 = vmatpush2.msra.mxu0 0.0
    %1341 = vmatprep.subr.mxu0 0.0
    %1342 = vmatpush2.msra.mxu0 0.0
    %1343 = vmatprep.subr.mxu0 0.0
    %1344 = vmatpush2.msra.mxu0 0.0
    %1345 = vmatprep.subr.mxu0 0.0
    %1346 = vmatpush2.msra.mxu0 0.0
    %1347 = vmatprep.subr.mxu0 0.0
    %1348 = vmatpush2.msra.mxu0 0.0
    %1349 = vmatprep.subr.mxu0 0.0
    %1350 = vmatpush2.msra.mxu0 0.0
    %1351 = vmatprep.subr.mxu0 0.0
    %1352 = vmatpush2.msra.mxu0 0.0
    %1353 = vmatprep.subr.mxu0 0.0
    %1354 = vmatpush2.msra.mxu0 0.0
    %1355 = vmatprep.subr.mxu0 0.0
    %1356 = vmatpush2.msra.mxu0 0.0
    %1357 = vmatprep.subr.mxu0 0.0
    %1358 = vmatpush2.msra.mxu0 0.0
    %1359 = vmatprep.subr.mxu0 0.0
    %1360 = vmatpush2.msra.mxu0 0.0
    %1361 = vmatprep.subr.mxu0 0.0
    %1362 = vmatpush2.msra.mxu0 0.0
    %1363 = vmatprep.subr.mxu0 0.0
    %1364 = vmatpush2.msra.mxu0 0.0
    %1365 = vmatprep.mubr.f32.mxu0 0.0
    %v1366 = vand.u32 %v1212, 4294901760
    %1367 = vmatmul.mubr.f32.gmra.mxu0 %v1366
    %v1368 = vpop.f32.mrf.mxu0
    %v1369 = vadd.f32 %v1288, %v1368
    %v1370 = vpop.f32.mrf.mxu0
    %1371 = vdwg.mxu0
    %1372 = vmatprep.subr.mxu0 0.0
    %1373 = vmatpush1.msra.mxu0 0.0
    %1374 = vmatprep.subr.mxu0 0.0
    %1375 = vmatpush1.msra.mxu0 0.0
    %1376 = vmatprep.subr.mxu0 0.0
    %1377 = vmatpush1.msra.mxu0 0.0
    %1378 = vmatprep.subr.mxu0 0.0
    %1379 = vmatpush1.msra.mxu0 0.0
    %1380 = vmatprep.subr.mxu0 0.0
    %1381 = vmatpush1.msra.mxu0 0.0
    %1382 = vmatprep.subr.mxu0 0.0
    %1383 = vmatpush1.msra.mxu0 0.0
    %1384 = vmatprep.subr.mxu0 0.0
    %1385 = vmatpush1.msra.mxu0 0.0
    %1386 = vmatprep.subr.mxu0 0.0
    %1387 = vmatpush1.msra.mxu0 0.0
    %1388 = vmatprep.subr.mxu0 0.0
    %1389 = vmatpush1.msra.mxu0 0.0
    %1390 = vmatprep.subr.mxu0 0.0
    %1391 = vmatpush1.msra.mxu0 0.0
    %1392 = vmatprep.subr.mxu0 0.0
    %1393 = vmatpush1.msra.mxu0 0.0
    %1394 = vmatprep.subr.mxu0 0.0
    %1395 = vmatpush1.msra.mxu0 0.0
    %1396 = vmatprep.subr.mxu0 0.0
    %1397 = vmatpush1.msra.mxu0 0.0
    %1398 = vmatprep.subr.mxu0 0.0
    %1399 = vmatpush1.msra.mxu0 0.0
    %1400 = vmatprep.subr.mxu0 0.0
    %v1401 = vand.u32 %v1202, 4294901760
    %v1402 = vsub.f32 %v1202, %v1401
    %1403 = vmatpush1.msra.mxu0 %v1402
    %1404 = vmatprep.subr.mxu0 0.0
    %v1405 = vand.u32 %v1201, 4294901760
    %v1406 = vsub.f32 %v1201, %v1405
    %1407 = vmatpush1.msra.mxu0 %v1406
    %1408 = vmatprep.subr.mxu0 0.0
    %1409 = vmatpush2.msra.mxu0 0.0
    %1410 = vmatprep.subr.mxu0 0.0
    %1411 = vmatpush2.msra.mxu0 0.0
    %1412 = vmatprep.subr.mxu0 0.0
    %1413 = vmatpush2.msra.mxu0 0.0
    %1414 = vmatprep.subr.mxu0 0.0
    %1415 = vmatpush2.msra.mxu0 0.0
    %1416 = vmatprep.subr.mxu0 0.0
    %1417 = vmatpush2.msra.mxu0 0.0
    %1418 = vmatprep.subr.mxu0 0.0
    %1419 = vmatpush2.msra.mxu0 0.0
    %1420 = vmatprep.subr.mxu0 0.0
    %1421 = vmatpush2.msra.mxu0 0.0
    %1422 = vmatprep.subr.mxu0 0.0
    %1423 = vmatpush2.msra.mxu0 0.0
    %1424 = vmatprep.subr.mxu0 0.0
    %1425 = vmatpush2.msra.mxu0 0.0
    %1426 = vmatprep.subr.mxu0 0.0
    %1427 = vmatpush2.msra.mxu0 0.0
    %1428 = vmatprep.subr.mxu0 0.0
    %1429 = vmatpush2.msra.mxu0 0.0
    %1430 = vmatprep.subr.mxu0 0.0
    %1431 = vmatpush2.msra.mxu0 0.0
    %1432 = vmatprep.subr.mxu0 0.0
    %1433 = vmatpush2.msra.mxu0 0.0
    %1434 = vmatprep.subr.mxu0 0.0
    %1435 = vmatpush2.msra.mxu0 0.0
    %1436 = vmatprep.subr.mxu0 0.0
    %1437 = vmatpush2.msra.mxu0 0.0
    %1438 = vmatprep.subr.mxu0 0.0
    %1439 = vmatpush2.msra.mxu0 0.0
    %1440 = vmatprep.mubr.f32.mxu0 0.0
    %v1441 = vand.u32 %v1212, 4294901760
    %v1442 = vsub.f32 %v1212, %v1441
    %1443 = vmatmul.mubr.f32.gmra.mxu0 %v1442
    %v1444 = vpop.f32.mrf.mxu0
    %v1445 = vadd.f32 %v1369, %v1444
    %v1446 = vpop.f32.mrf.mxu0
    %1447 = vdwg.mxu0
    %1448 = vmatprep.subr.mxu0 0.0
    %1449 = vmatpush1.msra.mxu0 0.0
    %1450 = vmatprep.subr.mxu0 0.0
    %1451 = vmatpush1.msra.mxu0 0.0
    %1452 = vmatprep.subr.mxu0 0.0
    %1453 = vmatpush1.msra.mxu0 0.0
    %1454 = vmatprep.subr.mxu0 0.0
    %1455 = vmatpush1.msra.mxu0 0.0
    %1456 = vmatprep.subr.mxu0 0.0
    %1457 = vmatpush1.msra.mxu0 0.0
    %1458 = vmatprep.subr.mxu0 0.0
    %1459 = vmatpush1.msra.mxu0 0.0
    %1460 = vmatprep.subr.mxu0 0.0
    %1461 = vmatpush1.msra.mxu0 0.0
    %1462 = vmatprep.subr.mxu0 0.0
    %1463 = vmatpush1.msra.mxu0 0.0
    %1464 = vmatprep.subr.mxu0 0.0
    %1465 = vmatpush1.msra.mxu0 0.0
    %1466 = vmatprep.subr.mxu0 0.0
    %1467 = vmatpush1.msra.mxu0 0.0
    %1468 = vmatprep.subr.mxu0 0.0
    %1469 = vmatpush1.msra.mxu0 0.0
    %1470 = vmatprep.subr.mxu0 0.0
    %1471 = vmatpush1.msra.mxu0 0.0
    %1472 = vmatprep.subr.mxu0 0.0
    %1473 = vmatpush1.msra.mxu0 0.0
    %1474 = vmatprep.subr.mxu0 0.0
    %1475 = vmatpush1.msra.mxu0 0.0
    %1476 = vmatprep.subr.mxu0 0.0
    %v1477 = vand.u32 %v1202, 4294901760
    %1478 = vmatpush1.msra.mxu0 %v1477
    %1479 = vmatprep.subr.mxu0 0.0
    %v1480 = vand.u32 %v1201, 4294901760
    %1481 = vmatpush1.msra.mxu0 %v1480
    %1482 = vmatprep.subr.mxu0 0.0
    %1483 = vmatpush2.msra.mxu0 0.0
    %1484 = vmatprep.subr.mxu0 0.0
    %1485 = vmatpush2.msra.mxu0 0.0
    %1486 = vmatprep.subr.mxu0 0.0
    %1487 = vmatpush2.msra.mxu0 0.0
    %1488 = vmatprep.subr.mxu0 0.0
    %1489 = vmatpush2.msra.mxu0 0.0
    %1490 = vmatprep.subr.mxu0 0.0
    %1491 = vmatpush2.msra.mxu0 0.0
    %1492 = vmatprep.subr.mxu0 0.0
    %1493 = vmatpush2.msra.mxu0 0.0
    %1494 = vmatprep.subr.mxu0 0.0
    %1495 = vmatpush2.msra.mxu0 0.0
    %1496 = vmatprep.subr.mxu0 0.0
    %1497 = vmatpush2.msra.mxu0 0.0
    %1498 = vmatprep.subr.mxu0 0.0
    %1499 = vmatpush2.msra.mxu0 0.0
    %1500 = vmatprep.subr.mxu0 0.0
    %1501 = vmatpush2.msra.mxu0 0.0
    %1502 = vmatprep.subr.mxu0 0.0
    %1503 = vmatpush2.msra.mxu0 0.0
    %1504 = vmatprep.subr.mxu0 0.0
    %1505 = vmatpush2.msra.mxu0 0.0
    %1506 = vmatprep.subr.mxu0 0.0
    %1507 = vmatpush2.msra.mxu0 0.0
    %1508 = vmatprep.subr.mxu0 0.0
    %1509 = vmatpush2.msra.mxu0 0.0
    %1510 = vmatprep.subr.mxu0 0.0
    %1511 = vmatpush2.msra.mxu0 0.0
    %1512 = vmatprep.subr.mxu0 0.0
    %1513 = vmatpush2.msra.mxu0 0.0
    %1514 = vmatprep.mubr.f32.mxu0 0.0
    %v1515 = vand.u32 %v1212, 4294901760
    %v1516 = vsub.f32 %v1212, %v1515
    %v1517 = vand.u32 %v1516, 4294901760
    %1518 = vmatmul.mubr.f32.gmra.mxu0 %v1517
    %v1519 = vpop.f32.mrf.mxu0
    %v1520 = vadd.f32 %v1445, %v1519
    %v1521 = vpop.f32.mrf.mxu0
    %1522 = vdwg.mxu0
    %1523 = vmatprep.subr.mxu0 0.0
    %1524 = vmatpush1.msra.mxu0 0.0
    %1525 = vmatprep.subr.mxu0 0.0
    %1526 = vmatpush1.msra.mxu0 0.0
    %1527 = vmatprep.subr.mxu0 0.0
    %1528 = vmatpush1.msra.mxu0 0.0
    %1529 = vmatprep.subr.mxu0 0.0
    %1530 = vmatpush1.msra.mxu0 0.0
    %1531 = vmatprep.subr.mxu0 0.0
    %1532 = vmatpush1.msra.mxu0 0.0
    %1533 = vmatprep.subr.mxu0 0.0
    %1534 = vmatpush1.msra.mxu0 0.0
    %1535 = vmatprep.subr.mxu0 0.0
    %1536 = vmatpush1.msra.mxu0 0.0
    %1537 = vmatprep.subr.mxu0 0.0
    %1538 = vmatpush1.msra.mxu0 0.0
    %1539 = vmatprep.subr.mxu0 0.0
    %1540 = vmatpush1.msra.mxu0 0.0
    %1541 = vmatprep.subr.mxu0 0.0
    %1542 = vmatpush1.msra.mxu0 0.0
    %1543 = vmatprep.subr.mxu0 0.0
    %1544 = vmatpush1.msra.mxu0 0.0
    %1545 = vmatprep.subr.mxu0 0.0
    %1546 = vmatpush1.msra.mxu0 0.0
    %1547 = vmatprep.subr.mxu0 0.0
    %1548 = vmatpush1.msra.mxu0 0.0
    %1549 = vmatprep.subr.mxu0 0.0
    %1550 = vmatpush1.msra.mxu0 0.0
    %1551 = vmatprep.subr.mxu0 0.0
    %v1552 = vand.u32 %v1202, 4294901760
    %v1553 = vsub.f32 %v1202, %v1552
    %v1554 = vand.u32 %v1553, 4294901760
    %1555 = vmatpush1.msra.mxu0 %v1554
    %1556 = vmatprep.subr.mxu0 0.0
    %v1557 = vand.u32 %v1201, 4294901760
    %v1558 = vsub.f32 %v1201, %v1557
    %v1559 = vand.u32 %v1558, 4294901760
    %1560 = vmatpush1.msra.mxu0 %v1559
    %1561 = vmatprep.subr.mxu0 0.0
    %1562 = vmatpush2.msra.mxu0 0.0
    %1563 = vmatprep.subr.mxu0 0.0
    %1564 = vmatpush2.msra.mxu0 0.0
    %1565 = vmatprep.subr.mxu0 0.0
    %1566 = vmatpush2.msra.mxu0 0.0
    %1567 = vmatprep.subr.mxu0 0.0
    %1568 = vmatpush2.msra.mxu0 0.0
    %1569 = vmatprep.subr.mxu0 0.0
    %1570 = vmatpush2.msra.mxu0 0.0
    %1571 = vmatprep.subr.mxu0 0.0
    %1572 = vmatpush2.msra.mxu0 0.0
    %1573 = vmatprep.subr.mxu0 0.0
    %1574 = vmatpush2.msra.mxu0 0.0
    %1575 = vmatprep.subr.mxu0 0.0
    %1576 = vmatpush2.msra.mxu0 0.0
    %1577 = vmatprep.subr.mxu0 0.0
    %1578 = vmatpush2.msra.mxu0 0.0
    %1579 = vmatprep.subr.mxu0 0.0
    %1580 = vmatpush2.msra.mxu0 0.0
    %1581 = vmatprep.subr.mxu0 0.0
    %1582 = vmatpush2.msra.mxu0 0.0
    %1583 = vmatprep.subr.mxu0 0.0
    %1584 = vmatpush2.msra.mxu0 0.0
    %1585 = vmatprep.subr.mxu0 0.0
    %1586 = vmatpush2.msra.mxu0 0.0
    %1587 = vmatprep.subr.mxu0 0.0
    %1588 = vmatpush2.msra.mxu0 0.0
    %1589 = vmatprep.subr.mxu0 0.0
    %1590 = vmatpush2.msra.mxu0 0.0
    %1591 = vmatprep.subr.mxu0 0.0
    %1592 = vmatpush2.msra.mxu0 0.0
    %1593 = vmatprep.mubr.f32.mxu0 0.0
    %v1594 = vand.u32 %v1212, 4294901760
    %1595 = vmatmul.mubr.f32.gmra.mxu0 %v1594
    %v1596 = vpop.f32.mrf.mxu0
    %v1597 = vadd.f32 %v1520, %v1596
    %v1598 = vpop.f32.mrf.mxu0
    %1599 = vdwg.mxu0
    %1600 = vmatprep.subr.mxu0 0.0
    %1601 = vmatpush1.msra.mxu0 0.0
    %1602 = vmatprep.subr.mxu0 0.0
    %1603 = vmatpush1.msra.mxu0 0.0
    %1604 = vmatprep.subr.mxu0 0.0
    %1605 = vmatpush1.msra.mxu0 0.0
    %1606 = vmatprep.subr.mxu0 0.0
    %1607 = vmatpush1.msra.mxu0 0.0
    %1608 = vmatprep.subr.mxu0 0.0
    %1609 = vmatpush1.msra.mxu0 0.0
    %1610 = vmatprep.subr.mxu0 0.0
    %1611 = vmatpush1.msra.mxu0 0.0
    %1612 = vmatprep.subr.mxu0 0.0
    %1613 = vmatpush1.msra.mxu0 0.0
    %1614 = vmatprep.subr.mxu0 0.0
    %1615 = vmatpush1.msra.mxu0 0.0
    %1616 = vmatprep.subr.mxu0 0.0
    %1617 = vmatpush1.msra.mxu0 0.0
    %1618 = vmatprep.subr.mxu0 0.0
    %1619 = vmatpush1.msra.mxu0 0.0
    %1620 = vmatprep.subr.mxu0 0.0
    %1621 = vmatpush1.msra.mxu0 0.0
    %1622 = vmatprep.subr.mxu0 0.0
    %1623 = vmatpush1.msra.mxu0 0.0
    %1624 = vmatprep.subr.mxu0 0.0
    %1625 = vmatpush1.msra.mxu0 0.0
    %1626 = vmatprep.subr.mxu0 0.0
    %1627 = vmatpush1.msra.mxu0 0.0
    %1628 = vmatprep.subr.mxu0 0.0
    %v1629 = vand.u32 %v1202, 4294901760
    %1630 = vmatpush1.msra.mxu0 %v1629
    %1631 = vmatprep.subr.mxu0 0.0
    %v1632 = vand.u32 %v1201, 4294901760
    %1633 = vmatpush1.msra.mxu0 %v1632
    %1634 = vmatprep.subr.mxu0 0.0
    %1635 = vmatpush2.msra.mxu0 0.0
    %1636 = vmatprep.subr.mxu0 0.0
    %1637 = vmatpush2.msra.mxu0 0.0
    %1638 = vmatprep.subr.mxu0 0.0
    %1639 = vmatpush2.msra.mxu0 0.0
    %1640 = vmatprep.subr.mxu0 0.0
    %1641 = vmatpush2.msra.mxu0 0.0
    %1642 = vmatprep.subr.mxu0 0.0
    %1643 = vmatpush2.msra.mxu0 0.0
    %1644 = vmatprep.subr.mxu0 0.0
    %1645 = vmatpush2.msra.mxu0 0.0
    %1646 = vmatprep.subr.mxu0 0.0
    %1647 = vmatpush2.msra.mxu0 0.0
    %1648 = vmatprep.subr.mxu0 0.0
    %1649 = vmatpush2.msra.mxu0 0.0
    %1650 = vmatprep.subr.mxu0 0.0
    %1651 = vmatpush2.msra.mxu0 0.0
    %1652 = vmatprep.subr.mxu0 0.0
    %1653 = vmatpush2.msra.mxu0 0.0
    %1654 = vmatprep.subr.mxu0 0.0
    %1655 = vmatpush2.msra.mxu0 0.0
    %1656 = vmatprep.subr.mxu0 0.0
    %1657 = vmatpush2.msra.mxu0 0.0
    %1658 = vmatprep.subr.mxu0 0.0
    %1659 = vmatpush2.msra.mxu0 0.0
    %1660 = vmatprep.subr.mxu0 0.0
    %1661 = vmatpush2.msra.mxu0 0.0
    %1662 = vmatprep.subr.mxu0 0.0
    %1663 = vmatpush2.msra.mxu0 0.0
    %1664 = vmatprep.subr.mxu0 0.0
    %1665 = vmatpush2.msra.mxu0 0.0
    %1666 = vmatprep.mubr.f32.mxu0 0.0
    %v1667 = vand.u32 %v1212, 4294901760
    %1668 = vmatmul.mubr.f32.gmra.mxu0 %v1667
    %v1669 = vpop.f32.mrf.mxu0
    %v1670 = vadd.f32 %v1597, %v1669
    %v1671 = vpop.f32.mrf.mxu0
    %1672 = vdwg.mxu0
    %v1674 = vrot.slane %v1670, 7
    %v1676 = vsub.f32 %v1670, %v1674
    %v1677 = vand.u32 2147483647, %v1676
    %v1678 = vsub.f32 0.0, %v1677
    %v1679 = vmul.f32 %v1678, 1.442695
    %v1680 = vpow.pop %v1679
    %v1681 = vadd.f32 %v1680, 1.0
    %v1682 = vrcp.pop %v1681
    %v1683 = vmul.f32 1.0, %v1682
    %v1684 = vsub.f32 1.0, %v1683
    %vm1685 = vcmp.ge.f32.partialorder %v1676, 0.0
    %v1686 = vsel %vm1685, %v1683, %v1684
    %v1687 = vsub.f32 1.0, %v1686
    %v1688 = vlaneseq
    %v1689 = vshrl.u32 %v1688, 7
    %vm1690 = vcmp.eq.s32.totalorder %v1689, 0
    %v1691 = vlaneseq
    %v1692 = vshrl.u32 %v1691, 7
    %v1693 = vsub.s32 1, %v1692
    %v1694 = vrot.slane %v1687, %v1693
    %v1695 = vlaneseq
    %v1696 = vshrl.u32 %v1695, 7
    %v1697 = vsub.s32 1, %v1696
    %v1698 = vrot.slane %v1686, %v1697
    %v1699 = vsel %vm1690, %v1694, %v1698
    %1700 = vst [vmem:[#allocation2] sm:$0x3] %v1699
    // Predicated region
    $region30: #{tpu_custom_call.1} parent=1 // pred_check
      _
    $region31: #{tpu_custom_call.1} parent=1 // pred_check_branch
      %1702 = sbr.rel (0) target = $region33
    $region32: #{tpu_custom_call.1} parent=1 // pred_region
      %s1704 = ssub.s32 32, 32
      %1705 = vsyncadd [#allocation3], %s1704
      %s1707 = sshll.u32 [#allocation2], 4
      %s1708 = int_to_ptr.vmem [resolvable:$true] %s1707
      %1710 = dma.vmem_to_hbm [thread:$0]  %s1708, 32, %s7, [#allocation3]
    $region33: #{tpu_custom_call.1} parent=1 // pred_fallthru
      _
    // Predicated region
    $region34: #{tpu_custom_call.1} parent=1 // pred_check
      _
    $region35: #{tpu_custom_call.1} parent=1 // pred_check_branch
      %1712 = sbr.rel (0) target = $region37
    $region36: #{tpu_custom_call.1} parent=1 // pred_region
      %1713 = dma.done [#allocation3], 32
    $region37: #{tpu_custom_call.1} parent=1 // pred_fallthru
      _
    %1714 = vsyncpa [#allocation3], 1

</llo_original>
